<compile_context>
chip_gen: v7x
topology: tpu7x:2x2x1
jax: 0.10.0
libtpu: 0.0.40
codegen_flags: <defaults>
</compile_context>

<pallas_src>
import jax
import jax.numpy as jnp
from jax.experimental import pallas as pl
from jax.experimental.pallas import tpu as pltpu

B = 2          # batch
S = 8          # seq_len == opt.max_seq_len
D = 128        # opt.bert_dim
P = 3          # opt.polarities_dim
DPAD = 128     # lane-dense padded classifier width
BS = B * S
VOCAB = 50


# ----------------------------- Pallas kernel -------------------------------
def senticgcn_kernel(text_ref, adj_ref, pwm_ref,
                     w1_ref, b1_ref, w2_ref, b2_ref, w3_ref, b3_ref,
                     fcw_ref, fcb_ref, out_ref):
    text = text_ref[...]                                   # (BS, D)
    pwm = pwm_ref[...]                                     # (BS, 2)

    # Hoisted lane-broadcast of the position weights (reused by all 3 layers).
    poswb = jnp.broadcast_to(pwm[:, 0:1], (BS, D))
    maskw = pwm[:, 1:2]                                    # aspect mask (BS, 1)

    # Per-batch adjacency and 1/(row-degree + 1); hoisted, reused by all layers.
    adjs, inv_denoms = [], []
    for b in range(B):
        a = adj_ref[b]                                                 # (S, S)
        inv = pl.reciprocal(jnp.sum(a, axis=1, keepdims=True) + 1.0,
                            approx=False)                              # (S, 1)
        adjs.append(a)
        inv_denoms.append(jnp.broadcast_to(inv, (S, D)))

    def gcn_relu(x, w_ref, b_ref):
        # position_weight(x) @ W on all batch rows at once (16x128 LHS).
        hidden = jnp.dot(poswb * x, w_ref[...],
                         preferred_element_type=jnp.float32)           # (BS, D)
        rows = []
        for b in range(B):
            hb = hidden[b * S:(b + 1) * S, :]              # (S, D) tile-aligned
            rows.append(jnp.dot(adjs[b], hb,
                                preferred_element_type=jnp.float32)
                        * inv_denoms[b])
        out = jnp.concatenate(rows, axis=0) + b_ref[...]               # (BS, D)
        return jnp.maximum(out, 0.0)

    x = gcn_relu(text, w1_ref, b1_ref)
    x = gcn_relu(x, w2_ref, b2_ref)
    x = gcn_relu(x, w3_ref, b3_ref)

    x = maskw * x                                          # aspect masking

    # Attention-score pooling per batch element (tiny per-batch shapes).
    pooled_rows = []
    for b in range(B):
        xb = x[b * S:(b + 1) * S, :]                       # (S, D)
        tb = text[b * S:(b + 1) * S, :]                    # (S, D)
        # colsum identity: sum_i (xb @ tb^T)[i, :] == (sum_i xb) @ tb^T
        colsum = jnp.sum(xb, axis=0, keepdims=True)        # (1, D)
        scores = jax.lax.dot_general(                      # (1, S), no transpose
            colsum, tb,
            dimension_numbers=(((1,), (1,)), ((), ())),
            preferred_element_type=jnp.float32)
        scores = scores - jnp.max(scores, axis=1, keepdims=True)
        e = jnp.exp(scores)
        alpha = e * pl.reciprocal(jnp.sum(e, axis=1, keepdims=True),
                                  approx=False)
        pooled_rows.append(jnp.dot(alpha, tb,
                                   preferred_element_type=jnp.float32))  # (1, D)

    pooled = jnp.concatenate(pooled_rows, axis=0)          # (B, D)
    logits = jnp.dot(pooled, fcw_ref[...],
                     preferred_element_type=jnp.float32) + fcb_ref[...]  # (B, DPAD)
    out_ref[...] = logits                                  # lane-dense store


def senticgcn_pallas(text_out, adj, posw, maskw, params):
    w1, b1, w2, b2, w3, b3, fcw, fcb = params
    text_flat = text_out.reshape(BS, D)
    # Pack position weights + aspect mask into one (BS, 2) input.
    pwm = jnp.concatenate([posw, maskw], axis=-1).reshape(BS, 2)
    # Zero-pad the classifier to 128 output lanes -> unmasked stores in-kernel.
    fcw_p = jnp.zeros((D, DPAD), jnp.float32).at[:, :P].set(fcw)
    fcb_p = jnp.zeros((1, DPAD), jnp.float32).at[:, :P].set(fcb)

    logits_padded = pl.pallas_call(
        senticgcn_kernel,
        out_shape=jax.ShapeDtypeStruct((B, DPAD), jnp.float32),
        grid=(1,),   # whole batch in a single kernel invocation
        in_specs=[
            pl.BlockSpec((BS, D), lambda i: (0, 0)),        # text_out (flat)
            pl.BlockSpec((B, S, S), lambda i: (0, 0, 0)),   # adjacency
            pl.BlockSpec((BS, 2), lambda i: (0, 0)),        # packed posw|maskw
            pl.BlockSpec((D, D), lambda i: (0, 0)),         # gc1 W
            pl.BlockSpec((1, D), lambda i: (0, 0)),         # gc1 b
            pl.BlockSpec((D, D), lambda i: (0, 0)),         # gc2 W
            pl.BlockSpec((1, D), lambda i: (0, 0)),         # gc2 b
            pl.BlockSpec((D, D), lambda i: (0, 0)),         # gc3 W
            pl.BlockSpec((1, D), lambda i: (0, 0)),         # gc3 b
            pl.BlockSpec((D, DPAD), lambda i: (0, 0)),      # fc W (lane padded)
            pl.BlockSpec((1, DPAD), lambda i: (0, 0)),      # fc b (lane padded)
        ],
        out_specs=pl.BlockSpec((B, DPAD), lambda i: (0, 0)),
        compiler_params=pltpu.CompilerParams(
            dimension_semantics=("arbitrary",)),
    )(text_flat, adj, pwm, w1, b1, w2, b2, w3, b3, fcw_p, fcb_p)
    return logits_padded[:, :P]


# ------------------------------- JAX glue -----------------------------------
def bert_standin(text_bert_indices, bert_segments_ids, word_emb, seg_emb, pos_emb):
    tok = word_emb[text_bert_indices]            # (B, S, D)
    seg = seg_emb[bert_segments_ids]             # (B, S, D)
    return (tok + seg + pos_emb[None, :, :]).astype(jnp.float32)


def position_weight_and_mask(aspect_double_idx, text_len, aspect_len):
    """Vectorized equivalent of SenticGCN_BERT.position_weight / .mask weights."""
    asp_start = aspect_double_idx[:, 0].astype(jnp.float32)[:, None]   # (B,1)
    asp_end = aspect_double_idx[:, 1].astype(jnp.float32)[:, None]
    tl = text_len.astype(jnp.float32)[:, None]
    cl = (text_len - aspect_len).astype(jnp.float32)[:, None]          # context_len
    j = jnp.arange(S, dtype=jnp.float32)[None, :]                      # (1,S)
    asp_end_clip = jnp.minimum(asp_end, float(S - 1))                  # max_seq_len = S

    w = jnp.where(j < asp_start, 1.0 - (asp_start - j) / cl,
        jnp.where(j <= asp_end_clip, 0.0,
        jnp.where(j < tl, 1.0 - (j - asp_end) / cl, 0.0)))
    m = ((j >= asp_start) & (j <= asp_end_clip)).astype(jnp.float32)
    return w[:, :, None], m[:, :, None]                                # (B,S,1) each


# --------------------------- pure-JAX reference ------------------------------
def gcn_ref(x, adj, w, b):
    hidden = x @ w
    denom = adj.sum(axis=2, keepdims=True) + 1.0
    return adj @ hidden / denom + b


def forward_ref(text_out, adj, posw, maskw, params):
    w1, b1, w2, b2, w3, b3, fcw, fcb = params
    x = jax.nn.relu(gcn_ref(posw * text_out, adj, w1, b1[0]))
    x = jax.nn.relu(gcn_ref(posw * x, adj, w2, b2[0]))
    x = jax.nn.relu(gcn_ref(posw * x, adj, w3, b3[0]))
    x = maskw * x
    alpha_mat = x @ jnp.swapaxes(text_out, 1, 2)
    alpha = jax.nn.softmax(alpha_mat.sum(1, keepdims=True), axis=2)
    pooled = (alpha @ text_out)[:, 0, :]
    return pooled @ fcw + fcb[0]


# ---------------------------------- main -------------------------------------
if __name__ == "__main__":
    key = jax.random.PRNGKey(0)
    keys = jax.random.split(key, 16)

    # GraphConvolution params: uniform(-stdv, stdv), stdv = 1/sqrt(out_features)
    stdv = 1.0 / (D ** 0.5)
    w1 = jax.random.uniform(keys[0], (D, D), jnp.float32, -stdv, stdv)
    b1 = jax.random.uniform(keys[1], (1, D), jnp.float32, -stdv, stdv)
    w2 = jax.random.uniform(keys[2], (D, D), jnp.float32, -stdv, stdv)
    b2 = jax.random.uniform(keys[3], (1, D), jnp.float32, -stdv, stdv)
    w3 = jax.random.uniform(keys[4], (D, D), jnp.float32, -stdv, stdv)
    b3 = jax.random.uniform(keys[5], (1, D), jnp.float32, -stdv, stdv)
    fcw = jax.random.uniform(keys[6], (D, P), jnp.float32, -stdv, stdv)
    fcb = jax.random.uniform(keys[7], (1, P), jnp.float32, -stdv, stdv)
    params = (w1, b1, w2, b2, w3, b3, fcw, fcb)

    # deterministic BERT stand-in embedding tables
    word_emb = jax.random.normal(keys[8], (VOCAB, D), jnp.float32) * 0.02
    seg_emb = jax.random.normal(keys[9], (2, D), jnp.float32) * 0.02
    pos_emb = jax.random.normal(keys[10], (S, D), jnp.float32) * 0.02

    # module inputs
    text_len_np = jnp.array([7, 6], dtype=jnp.int32)
    left_len_np = jnp.array([2, 1], dtype=jnp.int32)
    aspect_len_np = jnp.array([2, 2], dtype=jnp.int32)
    j_idx = jnp.arange(S)[None, :]
    text_indices = jnp.where(j_idx < text_len_np[:, None],
                             jax.random.randint(keys[11], (B, S), 1, VOCAB), 0)
    aspect_indices = jnp.where(j_idx < aspect_len_np[:, None],
                               jax.random.randint(keys[12], (B, S), 1, VOCAB), 0)
    left_indices = jnp.where(j_idx < left_len_np[:, None],
                             jax.random.randint(keys[13], (B, S), 1, VOCAB), 0)
    text_bert_indices = jax.random.randint(keys[14], (B, S), 1, VOCAB)
    bert_segments_ids = jnp.zeros((B, S), dtype=jnp.int32)
    adj = (jax.random.uniform(keys[15], (B, S, S)) > 0.5).astype(jnp.float32)
    adj = adj + jnp.eye(S, dtype=jnp.float32)[None]   # self loops, stays float32

    # forward glue (matches the PyTorch forward)
    text_len = jnp.sum(text_indices != 0, axis=-1)
    aspect_len = jnp.sum(aspect_indices != 0, axis=-1)
    left_len = jnp.sum(left_indices != 0, axis=-1)
    aspect_double_idx = jnp.concatenate(
        [left_len[:, None], (left_len + aspect_len - 1)[:, None]], axis=1)

    text_out = bert_standin(text_bert_indices, bert_segments_ids,
                            word_emb, seg_emb, pos_emb)
    posw, maskw = position_weight_and_mask(aspect_double_idx, text_len, aspect_len)

    out = senticgcn_pallas(text_out, adj, posw, maskw, params)
    out = jax.block_until_ready(out)

    ref = forward_ref(text_out, adj, posw, maskw, params)
    assert out.shape == (B, P)
    assert jnp.allclose(out, ref, atol=1e-4, rtol=1e-4), (out, ref)

    print("KERNEL_OK")
</pallas_src>

<mosaic_0001>
module attributes {stable_mosaic.version = 11 : i64} {
  func.func @senticgcn_kernel(%arg0: i32, %arg1: memref<16x128xf32, #tpu.memory_space<vmem>>, %arg2: memref<2x8x8xf32, #tpu.memory_space<vmem>>, %arg3: memref<16x2xf32, #tpu.memory_space<vmem>>, %arg4: memref<128x128xf32, #tpu.memory_space<vmem>>, %arg5: memref<1x128xf32, #tpu.memory_space<vmem>>, %arg6: memref<128x128xf32, #tpu.memory_space<vmem>>, %arg7: memref<1x128xf32, #tpu.memory_space<vmem>>, %arg8: memref<128x128xf32, #tpu.memory_space<vmem>>, %arg9: memref<1x128xf32, #tpu.memory_space<vmem>>, %arg10: memref<128x128xf32, #tpu.memory_space<vmem>>, %arg11: memref<1x128xf32, #tpu.memory_space<vmem>>, %arg12: memref<2x128xf32, #tpu.memory_space<vmem>>) attributes {dimension_semantics = [#tpu.dimension_semantics<arbitrary>], iteration_bounds = array<i64: 1>, scalar_prefetch = 0 : i64, scratch_operands = 0 : i64, tpu.core_type = #tpu.core_type<tc>, window_params = [{pipeline_mode = #tpu.pipeline_mode<synchronous>, transform_indices = @transform_0, window_bounds = array<i64: 16, 128>}, {pipeline_mode = #tpu.pipeline_mode<synchronous>, transform_indices = @transform_1, window_bounds = array<i64: 2, 8, 8>}, {pipeline_mode = #tpu.pipeline_mode<synchronous>, transform_indices = @transform_2, window_bounds = array<i64: 16, 2>}, {pipeline_mode = #tpu.pipeline_mode<synchronous>, transform_indices = @transform_3, window_bounds = array<i64: 128, 128>}, {pipeline_mode = #tpu.pipeline_mode<synchronous>, transform_indices = @transform_4, window_bounds = array<i64: 1, 128>}, {pipeline_mode = #tpu.pipeline_mode<synchronous>, transform_indices = @transform_5, window_bounds = array<i64: 128, 128>}, {pipeline_mode = #tpu.pipeline_mode<synchronous>, transform_indices = @transform_6, window_bounds = array<i64: 1, 128>}, {pipeline_mode = #tpu.pipeline_mode<synchronous>, transform_indices = @transform_7, window_bounds = array<i64: 128, 128>}, {pipeline_mode = #tpu.pipeline_mode<synchronous>, transform_indices = @transform_8, window_bounds = array<i64: 1, 128>}, {pipeline_mode = #tpu.pipeline_mode<synchronous>, transform_indices = @transform_9, window_bounds = array<i64: 128, 128>}, {pipeline_mode = #tpu.pipeline_mode<synchronous>, transform_indices = @transform_10, window_bounds = array<i64: 1, 128>}, {pipeline_mode = #tpu.pipeline_mode<synchronous>, transform_indices = @transform_11, window_bounds = array<i64: 2, 128>}]} {
    %c0 = arith.constant 0 : index
    %c0_0 = arith.constant 0 : index
    %0 = vector.load %arg1[%c0, %c0_0] : memref<16x128xf32, #tpu.memory_space<vmem>>, vector<16x128xf32>
    %c0_1 = arith.constant 0 : index
    %c0_2 = arith.constant 0 : index
    %1 = vector.load %arg3[%c0_1, %c0_2] : memref<16x2xf32, #tpu.memory_space<vmem>>, vector<16x2xf32>
    %2 = vector.extract_strided_slice %1 {offsets = [0, 0], sizes = [16, 1], strides = [1, 1]} : vector<16x2xf32> to vector<16x1xf32>
    %3 = vector.shape_cast %2 : vector<16x1xf32> to vector<16x1xf32>
    %4 = vector.broadcast %3 : vector<16x1xf32> to vector<16x128xf32>
    %5 = vector.extract_strided_slice %1 {offsets = [0, 1], sizes = [16, 1], strides = [1, 1]} : vector<16x2xf32> to vector<16x1xf32>
    %c0_3 = arith.constant 0 : index
    %c0_4 = arith.constant 0 : index
    %c0_5 = arith.constant 0 : index
    %6 = vector.load %arg2[%c0_3, %c0_4, %c0_5] : memref<2x8x8xf32, #tpu.memory_space<vmem>>, vector<1x8x8xf32>
    %7 = vector.shape_cast %6 : vector<1x8x8xf32> to vector<8x8xf32>
    %cst = arith.constant dense<0.000000e+00> : vector<8xf32>
    %8 = vector.multi_reduction <add>, %7, %cst [1] : vector<8x8xf32> to vector<8xf32>
    %9 = vector.shape_cast %8 : vector<8xf32> to vector<8x1xf32>
    %cst_6 = arith.constant 1.000000e+00 : f32
    %10 = vector.broadcast %cst_6 : f32 to vector<8x1xf32>
    %11 = arith.addf %9, %10 : vector<8x1xf32>
    %12 = tpu.reciprocal %11 : vector<8x1xf32> -> vector<8x1xf32>
    %13 = vector.shape_cast %12 : vector<8x1xf32> to vector<8x1xf32>
    %14 = vector.broadcast %13 : vector<8x1xf32> to vector<8x128xf32>
    %c1 = arith.constant 1 : index
    %c0_7 = arith.constant 0 : index
    %c0_8 = arith.constant 0 : index
    %15 = vector.load %arg2[%c1, %c0_7, %c0_8] : memref<2x8x8xf32, #tpu.memory_space<vmem>>, vector<1x8x8xf32>
    %16 = vector.shape_cast %15 : vector<1x8x8xf32> to vector<8x8xf32>
    %cst_9 = arith.constant dense<0.000000e+00> : vector<8xf32>
    %17 = vector.multi_reduction <add>, %16, %cst_9 [1] : vector<8x8xf32> to vector<8xf32>
    %18 = vector.shape_cast %17 : vector<8xf32> to vector<8x1xf32>
    %cst_10 = arith.constant 1.000000e+00 : f32
    %19 = vector.broadcast %cst_10 : f32 to vector<8x1xf32>
    %20 = arith.addf %18, %19 : vector<8x1xf32>
    %21 = tpu.reciprocal %20 : vector<8x1xf32> -> vector<8x1xf32>
    %22 = vector.shape_cast %21 : vector<8x1xf32> to vector<8x1xf32>
    %23 = vector.broadcast %22 : vector<8x1xf32> to vector<8x128xf32>
    %24 = arith.mulf %4, %0 : vector<16x128xf32>
    %c0_11 = arith.constant 0 : index
    %c0_12 = arith.constant 0 : index
    %25 = vector.load %arg4[%c0_11, %c0_12] : memref<128x128xf32, #tpu.memory_space<vmem>>, vector<128x128xf32>
    %cst_13 = arith.constant dense<0.000000e+00> : vector<16x128xf32>
    %26 = tpu.matmul %24, %25, %cst_13 {dimension_numbers = #tpu.dot_dimension_numbers<[1], [0], [0], [1], [0, 0, 1, 1], [], []>} : vector<16x128xf32>, vector<128x128xf32>, vector<16x128xf32> -> vector<16x128xf32>
    %27 = vector.extract_strided_slice %26 {offsets = [0, 0], sizes = [8, 128], strides = [1, 1]} : vector<16x128xf32> to vector<8x128xf32>
    %cst_14 = arith.constant dense<0.000000e+00> : vector<8x128xf32>
    %28 = tpu.matmul %7, %27, %cst_14 {dimension_numbers = #tpu.dot_dimension_numbers<[1], [0], [0], [1], [0, 0, 1, 1], [], []>} : vector<8x8xf32>, vector<8x128xf32>, vector<8x128xf32> -> vector<8x128xf32>
    %29 = arith.mulf %28, %14 : vector<8x128xf32>
    %30 = vector.extract_strided_slice %26 {offsets = [8, 0], sizes = [8, 128], strides = [1, 1]} : vector<16x128xf32> to vector<8x128xf32>
    %cst_15 = arith.constant dense<0.000000e+00> : vector<8x128xf32>
    %31 = tpu.matmul %16, %30, %cst_15 {dimension_numbers = #tpu.dot_dimension_numbers<[1], [0], [0], [1], [0, 0, 1, 1], [], []>} : vector<8x8xf32>, vector<8x128xf32>, vector<8x128xf32> -> vector<8x128xf32>
    %32 = arith.mulf %31, %23 : vector<8x128xf32>
    %33 = tpu.concatenate %29, %32 in 0 : vector<8x128xf32>, vector<8x128xf32> -> vector<16x128xf32>
    %c0_16 = arith.constant 0 : index
    %c0_17 = arith.constant 0 : index
    %34 = vector.load %arg5[%c0_16, %c0_17] : memref<1x128xf32, #tpu.memory_space<vmem>>, vector<1x128xf32>
    %35 = vector.broadcast %34 : vector<1x128xf32> to vector<16x128xf32>
    %36 = arith.addf %33, %35 : vector<16x128xf32>
    %cst_18 = arith.constant 0.000000e+00 : f32
    %37 = vector.broadcast %cst_18 : f32 to vector<16x128xf32>
    %38 = arith.maximumf %36, %37 : vector<16x128xf32>
    %39 = arith.mulf %4, %38 : vector<16x128xf32>
    %c0_19 = arith.constant 0 : index
    %c0_20 = arith.constant 0 : index
    %40 = vector.load %arg6[%c0_19, %c0_20] : memref<128x128xf32, #tpu.memory_space<vmem>>, vector<128x128xf32>
    %cst_21 = arith.constant dense<0.000000e+00> : vector<16x128xf32>
    %41 = tpu.matmul %39, %40, %cst_21 {dimension_numbers = #tpu.dot_dimension_numbers<[1], [0], [0], [1], [0, 0, 1, 1], [], []>} : vector<16x128xf32>, vector<128x128xf32>, vector<16x128xf32> -> vector<16x128xf32>
    %42 = vector.extract_strided_slice %41 {offsets = [0, 0], sizes = [8, 128], strides = [1, 1]} : vector<16x128xf32> to vector<8x128xf32>
    %cst_22 = arith.constant dense<0.000000e+00> : vector<8x128xf32>
    %43 = tpu.matmul %7, %42, %cst_22 {dimension_numbers = #tpu.dot_dimension_numbers<[1], [0], [0], [1], [0, 0, 1, 1], [], []>} : vector<8x8xf32>, vector<8x128xf32>, vector<8x128xf32> -> vector<8x128xf32>
    %44 = arith.mulf %43, %14 : vector<8x128xf32>
    %45 = vector.extract_strided_slice %41 {offsets = [8, 0], sizes = [8, 128], strides = [1, 1]} : vector<16x128xf32> to vector<8x128xf32>
    %cst_23 = arith.constant dense<0.000000e+00> : vector<8x128xf32>
    %46 = tpu.matmul %16, %45, %cst_23 {dimension_numbers = #tpu.dot_dimension_numbers<[1], [0], [0], [1], [0, 0, 1, 1], [], []>} : vector<8x8xf32>, vector<8x128xf32>, vector<8x128xf32> -> vector<8x128xf32>
    %47 = arith.mulf %46, %23 : vector<8x128xf32>
    %48 = tpu.concatenate %44, %47 in 0 : vector<8x128xf32>, vector<8x128xf32> -> vector<16x128xf32>
    %c0_24 = arith.constant 0 : index
    %c0_25 = arith.constant 0 : index
    %49 = vector.load %arg7[%c0_24, %c0_25] : memref<1x128xf32, #tpu.memory_space<vmem>>, vector<1x128xf32>
    %50 = vector.broadcast %49 : vector<1x128xf32> to vector<16x128xf32>
    %51 = arith.addf %48, %50 : vector<16x128xf32>
    %cst_26 = arith.constant 0.000000e+00 : f32
    %52 = vector.broadcast %cst_26 : f32 to vector<16x128xf32>
    %53 = arith.maximumf %51, %52 : vector<16x128xf32>
    %54 = arith.mulf %4, %53 : vector<16x128xf32>
    %c0_27 = arith.constant 0 : index
    %c0_28 = arith.constant 0 : index
    %55 = vector.load %arg8[%c0_27, %c0_28] : memref<128x128xf32, #tpu.memory_space<vmem>>, vector<128x128xf32>
    %cst_29 = arith.constant dense<0.000000e+00> : vector<16x128xf32>
    %56 = tpu.matmul %54, %55, %cst_29 {dimension_numbers = #tpu.dot_dimension_numbers<[1], [0], [0], [1], [0, 0, 1, 1], [], []>} : vector<16x128xf32>, vector<128x128xf32>, vector<16x128xf32> -> vector<16x128xf32>
    %57 = vector.extract_strided_slice %56 {offsets = [0, 0], sizes = [8, 128], strides = [1, 1]} : vector<16x128xf32> to vector<8x128xf32>
    %cst_30 = arith.constant dense<0.000000e+00> : vector<8x128xf32>
    %58 = tpu.matmul %7, %57, %cst_30 {dimension_numbers = #tpu.dot_dimension_numbers<[1], [0], [0], [1], [0, 0, 1, 1], [], []>} : vector<8x8xf32>, vector<8x128xf32>, vector<8x128xf32> -> vector<8x128xf32>
    %59 = arith.mulf %58, %14 : vector<8x128xf32>
    %60 = vector.extract_strided_slice %56 {offsets = [8, 0], sizes = [8, 128], strides = [1, 1]} : vector<16x128xf32> to vector<8x128xf32>
    %cst_31 = arith.constant dense<0.000000e+00> : vector<8x128xf32>
    %61 = tpu.matmul %16, %60, %cst_31 {dimension_numbers = #tpu.dot_dimension_numbers<[1], [0], [0], [1], [0, 0, 1, 1], [], []>} : vector<8x8xf32>, vector<8x128xf32>, vector<8x128xf32> -> vector<8x128xf32>
    %62 = arith.mulf %61, %23 : vector<8x128xf32>
    %63 = tpu.concatenate %59, %62 in 0 : vector<8x128xf32>, vector<8x128xf32> -> vector<16x128xf32>
    %c0_32 = arith.constant 0 : index
    %c0_33 = arith.constant 0 : index
    %64 = vector.load %arg9[%c0_32, %c0_33] : memref<1x128xf32, #tpu.memory_space<vmem>>, vector<1x128xf32>
    %65 = vector.broadcast %64 : vector<1x128xf32> to vector<16x128xf32>
    %66 = arith.addf %63, %65 : vector<16x128xf32>
    %cst_34 = arith.constant 0.000000e+00 : f32
    %67 = vector.broadcast %cst_34 : f32 to vector<16x128xf32>
    %68 = arith.maximumf %66, %67 : vector<16x128xf32>
    %69 = vector.broadcast %5 : vector<16x1xf32> to vector<16x128xf32>
    %70 = arith.mulf %69, %68 : vector<16x128xf32>
    %71 = vector.extract_strided_slice %70 {offsets = [0, 0], sizes = [8, 128], strides = [1, 1]} : vector<16x128xf32> to vector<8x128xf32>
    %72 = vector.extract_strided_slice %0 {offsets = [0, 0], sizes = [8, 128], strides = [1, 1]} : vector<16x128xf32> to vector<8x128xf32>
    %cst_35 = arith.constant dense<0.000000e+00> : vector<128xf32>
    %73 = vector.multi_reduction <add>, %71, %cst_35 [0] : vector<8x128xf32> to vector<128xf32>
    %74 = vector.shape_cast %73 : vector<128xf32> to vector<1x128xf32>
    %cst_36 = arith.constant dense<0.000000e+00> : vector<1x8xf32>
    %75 = tpu.matmul %74, %72, %cst_36 {dimension_numbers = #tpu.dot_dimension_numbers<[1], [1], [0], [0], [0, 0, 1, 0], [], []>} : vector<1x128xf32>, vector<8x128xf32>, vector<1x8xf32> -> vector<1x8xf32>
    %cst_37 = arith.constant dense<0xFF800000> : vector<1xf32>
    %76 = vector.multi_reduction <maximumf>, %75, %cst_37 [1] : vector<1x8xf32> to vector<1xf32>
    %77 = vector.shape_cast %76 : vector<1xf32> to vector<1x1xf32>
    %78 = vector.broadcast %77 : vector<1x1xf32> to vector<1x8xf32>
    %79 = arith.subf %75, %78 : vector<1x8xf32>
    %80 = math.exp %79 : vector<1x8xf32>
    %cst_38 = arith.constant dense<0.000000e+00> : vector<1xf32>
    %81 = vector.multi_reduction <add>, %80, %cst_38 [1] : vector<1x8xf32> to vector<1xf32>
    %82 = vector.shape_cast %81 : vector<1xf32> to vector<1x1xf32>
    %83 = tpu.reciprocal %82 : vector<1x1xf32> -> vector<1x1xf32>
    %84 = vector.broadcast %83 : vector<1x1xf32> to vector<1x8xf32>
    %85 = arith.mulf %80, %84 : vector<1x8xf32>
    %cst_39 = arith.constant dense<0.000000e+00> : vector<1x128xf32>
    %86 = tpu.matmul %85, %72, %cst_39 {dimension_numbers = #tpu.dot_dimension_numbers<[1], [0], [0], [1], [0, 0, 1, 1], [], []>} : vector<1x8xf32>, vector<8x128xf32>, vector<1x128xf32> -> vector<1x128xf32>
    %87 = vector.extract_strided_slice %70 {offsets = [8, 0], sizes = [8, 128], strides = [1, 1]} : vector<16x128xf32> to vector<8x128xf32>
    %88 = vector.extract_strided_slice %0 {offsets = [8, 0], sizes = [8, 128], strides = [1, 1]} : vector<16x128xf32> to vector<8x128xf32>
    %cst_40 = arith.constant dense<0.000000e+00> : vector<128xf32>
    %89 = vector.multi_reduction <add>, %87, %cst_40 [0] : vector<8x128xf32> to vector<128xf32>
    %90 = vector.shape_cast %89 : vector<128xf32> to vector<1x128xf32>
    %cst_41 = arith.constant dense<0.000000e+00> : vector<1x8xf32>
    %91 = tpu.matmul %90, %88, %cst_41 {dimension_numbers = #tpu.dot_dimension_numbers<[1], [1], [0], [0], [0, 0, 1, 0], [], []>} : vector<1x128xf32>, vector<8x128xf32>, vector<1x8xf32> -> vector<1x8xf32>
    %cst_42 = arith.constant dense<0xFF800000> : vector<1xf32>
    %92 = vector.multi_reduction <maximumf>, %91, %cst_42 [1] : vector<1x8xf32> to vector<1xf32>
    %93 = vector.shape_cast %92 : vector<1xf32> to vector<1x1xf32>
    %94 = vector.broadcast %93 : vector<1x1xf32> to vector<1x8xf32>
    %95 = arith.subf %91, %94 : vector<1x8xf32>
    %96 = math.exp %95 : vector<1x8xf32>
    %cst_43 = arith.constant dense<0.000000e+00> : vector<1xf32>
    %97 = vector.multi_reduction <add>, %96, %cst_43 [1] : vector<1x8xf32> to vector<1xf32>
    %98 = vector.shape_cast %97 : vector<1xf32> to vector<1x1xf32>
    %99 = tpu.reciprocal %98 : vector<1x1xf32> -> vector<1x1xf32>
    %100 = vector.broadcast %99 : vector<1x1xf32> to vector<1x8xf32>
    %101 = arith.mulf %96, %100 : vector<1x8xf32>
    %cst_44 = arith.constant dense<0.000000e+00> : vector<1x128xf32>
    %102 = tpu.matmul %101, %88, %cst_44 {dimension_numbers = #tpu.dot_dimension_numbers<[1], [0], [0], [1], [0, 0, 1, 1], [], []>} : vector<1x8xf32>, vector<8x128xf32>, vector<1x128xf32> -> vector<1x128xf32>
    %103 = tpu.concatenate %86, %102 in 0 : vector<1x128xf32>, vector<1x128xf32> -> vector<2x128xf32>
    %c0_45 = arith.constant 0 : index
    %c0_46 = arith.constant 0 : index
    %104 = vector.load %arg10[%c0_45, %c0_46] : memref<128x128xf32, #tpu.memory_space<vmem>>, vector<128x128xf32>
    %cst_47 = arith.constant dense<0.000000e+00> : vector<2x128xf32>
    %105 = tpu.matmul %103, %104, %cst_47 {dimension_numbers = #tpu.dot_dimension_numbers<[1], [0], [0], [1], [0, 0, 1, 1], [], []>} : vector<2x128xf32>, vector<128x128xf32>, vector<2x128xf32> -> vector<2x128xf32>
    %c0_48 = arith.constant 0 : index
    %c0_49 = arith.constant 0 : index
    %106 = vector.load %arg11[%c0_48, %c0_49] : memref<1x128xf32, #tpu.memory_space<vmem>>, vector<1x128xf32>
    %107 = vector.broadcast %106 : vector<1x128xf32> to vector<2x128xf32>
    %108 = arith.addf %105, %107 : vector<2x128xf32>
    %c0_50 = arith.constant 0 : index
    %c0_51 = arith.constant 0 : index
    %109 = vector.load %arg12[%c0_50, %c0_51] : memref<2x128xf32, #tpu.memory_space<vmem>>, vector<2x128xf32>
    tpu.vector_store %arg12[%c0_50, %c0_51], %108 {strides = array<i32>} : memref<2x128xf32, #tpu.memory_space<vmem>>, vector<2x128xf32>,
    return
  }
  func.func @transform_0(%arg0: i32) -> (i32, i32) {
    %c0_i32 = arith.constant 0 : i32
    %c0_i32_0 = arith.constant 0 : i32
    %c0_i32_1 = arith.constant 0 : i32
    return %c0_i32, %c0_i32_0 : i32, i32
  }
  func.func @transform_1(%arg0: i32) -> (i32, i32, i32) {
    %c0_i32 = arith.constant 0 : i32
    %c0_i32_0 = arith.constant 0 : i32
    %c0_i32_1 = arith.constant 0 : i32
    %c0_i32_2 = arith.constant 0 : i32
    return %c0_i32, %c0_i32_0, %c0_i32_1 : i32, i32, i32
  }
  func.func @transform_2(%arg0: i32) -> (i32, i32) {
    %c0_i32 = arith.constant 0 : i32
    %c0_i32_0 = arith.constant 0 : i32
    %c0_i32_1 = arith.constant 0 : i32
    return %c0_i32, %c0_i32_0 : i32, i32
  }
  func.func @transform_3(%arg0: i32) -> (i32, i32) {
    %c0_i32 = arith.constant 0 : i32
    %c0_i32_0 = arith.constant 0 : i32
    %c0_i32_1 = arith.constant 0 : i32
    return %c0_i32, %c0_i32_0 : i32, i32
  }
  func.func @transform_4(%arg0: i32) -> (i32, i32) {
    %c0_i32 = arith.constant 0 : i32
    %c0_i32_0 = arith.constant 0 : i32
    %c0_i32_1 = arith.constant 0 : i32
    return %c0_i32, %c0_i32_0 : i32, i32
  }
  func.func @transform_5(%arg0: i32) -> (i32, i32) {
    %c0_i32 = arith.constant 0 : i32
    %c0_i32_0 = arith.constant 0 : i32
    %c0_i32_1 = arith.constant 0 : i32
    return %c0_i32, %c0_i32_0 : i32, i32
  }
  func.func @transform_6(%arg0: i32) -> (i32, i32) {
    %c0_i32 = arith.constant 0 : i32
    %c0_i32_0 = arith.constant 0 : i32
    %c0_i32_1 = arith.constant 0 : i32
    return %c0_i32, %c0_i32_0 : i32, i32
  }
  func.func @transform_7(%arg0: i32) -> (i32, i32) {
    %c0_i32 = arith.constant 0 : i32
    %c0_i32_0 = arith.constant 0 : i32
    %c0_i32_1 = arith.constant 0 : i32
    return %c0_i32, %c0_i32_0 : i32, i32
  }
  func.func @transform_8(%arg0: i32) -> (i32, i32) {
    %c0_i32 = arith.constant 0 : i32
    %c0_i32_0 = arith.constant 0 : i32
    %c0_i32_1 = arith.constant 0 : i32
    return %c0_i32, %c0_i32_0 : i32, i32
  }
  func.func @transform_9(%arg0: i32) -> (i32, i32) {
    %c0_i32 = arith.constant 0 : i32
    %c0_i32_0 = arith.constant 0 : i32
    %c0_i32_1 = arith.constant 0 : i32
    return %c0_i32, %c0_i32_0 : i32, i32
  }
  func.func @transform_10(%arg0: i32) -> (i32, i32) {
    %c0_i32 = arith.constant 0 : i32
    %c0_i32_0 = arith.constant 0 : i32
    %c0_i32_1 = arith.constant 0 : i32
    return %c0_i32, %c0_i32_0 : i32, i32
  }
  func.func @transform_11(%arg0: i32) -> (i32, i32) {
    %c0_i32 = arith.constant 0 : i32
    %c0_i32_0 = arith.constant 0 : i32
    %c0_i32_1 = arith.constant 0 : i32
    return %c0_i32, %c0_i32_0 : i32, i32
  }
}

</mosaic_0001>

<llo_original>
// kernel: tpu_custom_call.1
$region0: #{tpu_custom_call.1}
  #allocation0 [shape = 'u32[]', space=smem, size = 0x4, offset = 0x4, fixed_abs, tag = 'smem constant byte address 0x4 - core index']
  #allocation1 [shape = 'u32[144,128]{1,0:T(1,128)}', space=vmem, size = 0x12000, scoped, tag = 'internal scratch']
  %s0 = inlined_call_operand.vmem [shape: f32[16,128], index: 0, kind: input, shape index: {}]
  %s1 = inlined_call_operand.hbm [shape: f32[2,8,8], index: 1, kind: input, shape index: {}]
  %s2 = inlined_call_operand.vmem [shape: f32[16,2], index: 2, kind: input, shape index: {}]
  %s3 = inlined_call_operand.hbm [shape: f32[128,128], index: 3, kind: input, shape index: {}]
  %s4 = inlined_call_operand.vmem [shape: f32[1,128], index: 4, kind: input, shape index: {}]
  %s5 = inlined_call_operand.hbm [shape: f32[128,128], index: 5, kind: input, shape index: {}]
  %s6 = inlined_call_operand.vmem [shape: f32[1,128], index: 6, kind: input, shape index: {}]
  %s7 = inlined_call_operand.hbm [shape: f32[128,128], index: 7, kind: input, shape index: {}]
  %s8 = inlined_call_operand.vmem [shape: f32[1,128], index: 8, kind: input, shape index: {}]
  %s9 = inlined_call_operand.hbm [shape: f32[128,128], index: 9, kind: input, shape index: {}]
  %s10 = inlined_call_operand.vmem [shape: f32[1,128], index: 10, kind: input, shape index: {}]
  %s11 = inlined_call_operand.hbm [shape: f32[2,128], index: 11, kind: output, shape index: {}]
  %s12 = sld [smem:[#allocation0]]
  $region74: #{tpu_custom_call.1} parent=0
    _
  %s14 = ssub.s32 1, %s12
  %s15 = scalar_select 0, %s14, %s12
  $region1: #{tpu_custom_call.1} parent=0
    #allocation2 [shape = 'u8[8192]{0}', space=vmem, size = 0x2000, scoped, tag = 'input window, operand 1, single buffered']
    #allocation3 [shape = 's32[1]{0}', space=sflag, size = 0x4, scoped, tag = 'scoped memory for tpu_custom_call.1']
    #allocation4 [shape = 's32[1]{0}', space=sflag, size = 0x4, scoped, tag = 'scoped memory for tpu_custom_call.1']
    #allocation5 [shape = 'u8[65536]{0}', space=vmem, size = 0x10000, scoped, tag = 'input window, operand 3, single buffered']
    #allocation6 [shape = 's32[1]{0}', space=sflag, size = 0x4, scoped, tag = 'scoped memory for tpu_custom_call.1']
    #allocation7 [shape = 'u8[65536]{0}', space=vmem, size = 0x10000, scoped, tag = 'input window, operand 5, single buffered']
    #allocation8 [shape = 'u8[65536]{0}', space=vmem, size = 0x10000, scoped, tag = 'input window, operand 7, single buffered']
    #allocation9 [shape = 's32[1]{0}', space=sflag, size = 0x4, scoped, tag = 'scoped memory for tpu_custom_call.1']
    #allocation10 [shape = 'u8[65536]{0}', space=vmem, size = 0x10000, scoped, tag = 'input window, operand 9, single buffered']
    #allocation11 [shape = 'u8[1024]{0}', space=vmem, size = 0x400, scoped, tag = 'output window, operand 0, single buffered']
    %16 = vsyncpa [#allocation3], 0
    %17 = vsyncpa [#allocation6], 0
    %18 = vsyncpa [#allocation9], 0
    %19 = vsyncpa [#allocation4], 0
    // Predicated region
    $region2: #{tpu_custom_call.1} parent=1 // pred_check
      _
    $region3: #{tpu_custom_call.1} parent=1 // pred_check_branch
      %21 = sbr.rel (0) target = $region5
    $region4: #{tpu_custom_call.1} parent=1 // pred_region
      _
    $region5: #{tpu_custom_call.1} parent=1 // pred_fallthru
      _
    // Predicated region
    $region6: #{tpu_custom_call.1} parent=1 // pred_check
      _
    $region7: #{tpu_custom_call.1} parent=1 // pred_check_branch
      %23 = sbr.rel (0) target = $region9
    $region8: #{tpu_custom_call.1} parent=1 // pred_region
      %s25 = ssub.s32 256, 256
      %26 = vsyncadd [#allocation3], %s25
      %s27 = sshll.u32 [#allocation2], 4
      %s28 = int_to_ptr.vmem [resolvable:$true] %s27
      %33 = dma.hbm_to_vmem [thread:$0]  %s1, 256, %s28, [#allocation3], 128, 128, 8
    $region9: #{tpu_custom_call.1} parent=1 // pred_fallthru
      _
    // Predicated region
    $region10: #{tpu_custom_call.1} parent=1 // pred_check
      _
    $region11: #{tpu_custom_call.1} parent=1 // pred_check_branch
      %35 = sbr.rel (0) target = $region13
    $region12: #{tpu_custom_call.1} parent=1 // pred_region
      _
    $region13: #{tpu_custom_call.1} parent=1 // pred_fallthru
      _
    // Predicated region
    $region14: #{tpu_custom_call.1} parent=1 // pred_check
      _
    $region15: #{tpu_custom_call.1} parent=1 // pred_check_branch
      %37 = sbr.rel (0) target = $region17
    $region16: #{tpu_custom_call.1} parent=1 // pred_region
      %s39 = ssub.s32 2048, 2048
      %40 = vsyncadd [#allocation6], %s39
      %s41 = sshll.u32 [#allocation5], 4
      %s42 = int_to_ptr.vmem [resolvable:$true] %s41
      %47 = dma.hbm_to_vmem [thread:$0]  %s3, 2048, %s42, [#allocation6], 128, 128, 8
    $region17: #{tpu_custom_call.1} parent=1 // pred_fallthru
      _
    // Predicated region
    $region18: #{tpu_custom_call.1} parent=1 // pred_check
      _
    $region19: #{tpu_custom_call.1} parent=1 // pred_check_branch
      %49 = sbr.rel (0) target = $region21
    $region20: #{tpu_custom_call.1} parent=1 // pred_region
      _
    $region21: #{tpu_custom_call.1} parent=1 // pred_fallthru
      _
    // Predicated region
    $region22: #{tpu_custom_call.1} parent=1 // pred_check
      _
    $region23: #{tpu_custom_call.1} parent=1 // pred_check_branch
      %51 = sbr.rel (0) target = $region25
    $region24: #{tpu_custom_call.1} parent=1 // pred_region
      %s53 = ssub.s32 2048, 2048
      %54 = vsyncadd [#allocation6], %s53
      %s55 = sshll.u32 [#allocation7], 4
      %s56 = int_to_ptr.vmem [resolvable:$true] %s55
      %61 = dma.hbm_to_vmem [thread:$0]  %s5, 2048, %s56, [#allocation6], 128, 128, 8
    $region25: #{tpu_custom_call.1} parent=1 // pred_fallthru
      _
    // Predicated region
    $region26: #{tpu_custom_call.1} parent=1 // pred_check
      _
    $region27: #{tpu_custom_call.1} parent=1 // pred_check_branch
      %63 = sbr.rel (0) target = $region29
    $region28: #{tpu_custom_call.1} parent=1 // pred_region
      _
    $region29: #{tpu_custom_call.1} parent=1 // pred_fallthru
      _
    // Predicated region
    $region30: #{tpu_custom_call.1} parent=1 // pred_check
      _
    $region31: #{tpu_custom_call.1} parent=1 // pred_check_branch
      %65 = sbr.rel (0) target = $region33
    $region32: #{tpu_custom_call.1} parent=1 // pred_region
      %s67 = ssub.s32 2048, 2048
      %68 = vsyncadd [#allocation9], %s67
      %s69 = sshll.u32 [#allocation8], 4
      %s70 = int_to_ptr.vmem [resolvable:$true] %s69
      %75 = dma.hbm_to_vmem [thread:$0]  %s7, 2048, %s70, [#allocation9], 128, 128, 8
    $region33: #{tpu_custom_call.1} parent=1 // pred_fallthru
      _
    // Predicated region
    $region34: #{tpu_custom_call.1} parent=1 // pred_check
      _
    $region35: #{tpu_custom_call.1} parent=1 // pred_check_branch
      %77 = sbr.rel (0) target = $region37
    $region36: #{tpu_custom_call.1} parent=1 // pred_region
      _
    $region37: #{tpu_custom_call.1} parent=1 // pred_fallthru
      _
    // Predicated region
    $region38: #{tpu_custom_call.1} parent=1 // pred_check
      _
    $region39: #{tpu_custom_call.1} parent=1 // pred_check_branch
      %79 = sbr.rel (0) target = $region41
    $region40: #{tpu_custom_call.1} parent=1 // pred_region
      %s81 = ssub.s32 2048, 2048
      %82 = vsyncadd [#allocation9], %s81
      %s83 = sshll.u32 [#allocation10], 4
      %s84 = int_to_ptr.vmem [resolvable:$true] %s83
      %89 = dma.hbm_to_vmem [thread:$0]  %s9, 2048, %s84, [#allocation9], 128, 128, 8
    $region41: #{tpu_custom_call.1} parent=1 // pred_fallthru
      _
    // Predicated region
    $region42: #{tpu_custom_call.1} parent=1 // pred_check
      _
    $region43: #{tpu_custom_call.1} parent=1 // pred_check_branch
      %91 = sbr.rel (0) target = $region45
    $region44: #{tpu_custom_call.1} parent=1 // pred_region
      _
    $region45: #{tpu_custom_call.1} parent=1 // pred_fallthru
      _
    // Predicated region
    $region46: #{tpu_custom_call.1} parent=1 // pred_check
      _
    $region47: #{tpu_custom_call.1} parent=1 // pred_check_branch
      %93 = sbr.rel (0) target = $region49
    $region48: #{tpu_custom_call.1} parent=1 // pred_region
      %94 = dma.done [#allocation3], 256
    $region49: #{tpu_custom_call.1} parent=1 // pred_fallthru
      _
    // Predicated region
    $region50: #{tpu_custom_call.1} parent=1 // pred_check
      _
    $region51: #{tpu_custom_call.1} parent=1 // pred_check_branch
      %96 = sbr.rel (0) target = $region53
    $region52: #{tpu_custom_call.1} parent=1 // pred_region
      %97 = dma.done [#allocation6], 2048
    $region53: #{tpu_custom_call.1} parent=1 // pred_fallthru
      _
    // Predicated region
    $region54: #{tpu_custom_call.1} parent=1 // pred_check
      _
    $region55: #{tpu_custom_call.1} parent=1 // pred_check_branch
      %99 = sbr.rel (0) target = $region57
    $region56: #{tpu_custom_call.1} parent=1 // pred_region
      %100 = dma.done [#allocation6], 2048
    $region57: #{tpu_custom_call.1} parent=1 // pred_fallthru
      _
    // Predicated region
    $region58: #{tpu_custom_call.1} parent=1 // pred_check
      _
    $region59: #{tpu_custom_call.1} parent=1 // pred_check_branch
      %102 = sbr.rel (0) target = $region61
    $region60: #{tpu_custom_call.1} parent=1 // pred_region
      %103 = dma.done [#allocation9], 2048
    $region61: #{tpu_custom_call.1} parent=1 // pred_fallthru
      _
    // Predicated region
    $region62: #{tpu_custom_call.1} parent=1 // pred_check
      _
    $region63: #{tpu_custom_call.1} parent=1 // pred_check_branch
      %105 = sbr.rel (0) target = $region65
    $region64: #{tpu_custom_call.1} parent=1 // pred_region
      %106 = dma.done [#allocation9], 2048
    $region65: #{tpu_custom_call.1} parent=1 // pred_fallthru
      _
    %v107 = vld [vmem:[%s0] sm:$0xff]
    %v108 = vld [vmem:[%s0 + $0x8] sm:$0xff]
    %v109 = vld [vmem:[%s2] sm:$0xff]
    %v110 = vld [vmem:[%s2 + $0x8] sm:$0xff]
    %112 = vset.pattern.permute.xlu0 0
    %113 = vperm.xlu0 %112, %v109
    %v114 = vpop.permute.xlu0 %113
    %117 = vset.pattern.permute.xlu0 0
    %118 = vperm.xlu0 %117, %v110
    %v119 = vpop.permute.xlu0 %118
    %v121 = vld [vmem:[#allocation2] sm:$0xff]
    %vm122 = vcmask 64512
    %v123 = vsel %vm122, %v121, 0.0
    %124 = vadd.xlane.f32.xlu0 %v123
    %v125 = vpop.xlane.xlu0 %124
    %v126 = vadd.f32 %v125, 1.0
    %v127 = vrcp.pop %v126
    %s128 = scalar_lea.vmem [#allocation2], 8
    %v129 = vld [vmem:[%s128] sm:$0xff]
    %v130 = vsel %vm122, %v129, 0.0
    %131 = vadd.xlane.f32.xlu0 %v130
    %v132 = vpop.xlane.xlu0 %131
    %v133 = vadd.f32 %v132, 1.0
    %v134 = vrcp.pop %v133
    %v135 = vmul.f32 %v114, %v107
    %v136 = vmul.f32 %v119, %v108
    %v137 = vld [vmem:[#allocation5] sm:$0xff]
    %v138 = vld [vmem:[#allocation5 + $0x8] sm:$0xff]
    %v139 = vld [vmem:[#allocation5 + $0x10] sm:$0xff]
    %v140 = vld [vmem:[#allocation5 + $0x18] sm:$0xff]
    %v141 = vld [vmem:[#allocation5 + $0x20] sm:$0xff]
    %v142 = vld [vmem:[#allocation5 + $0x28] sm:$0xff]
    %v143 = vld [vmem:[#allocation5 + $0x30] sm:$0xff]
    %v144 = vld [vmem:[#allocation5 + $0x38] sm:$0xff]
    %v145 = vld [vmem:[#allocation5 + $0x40] sm:$0xff]
    %v146 = vld [vmem:[#allocation5 + $0x48] sm:$0xff]
    %v147 = vld [vmem:[#allocation5 + $0x50] sm:$0xff]
    %v148 = vld [vmem:[#allocation5 + $0x58] sm:$0xff]
    %v149 = vld [vmem:[#allocation5 + $0x60] sm:$0xff]
    %v150 = vld [vmem:[#allocation5 + $0x68] sm:$0xff]
    %v151 = vld [vmem:[#allocation5 + $0x70] sm:$0xff]
    %v152 = vld [vmem:[#allocation5 + $0x78] sm:$0xff]
    %153 = vmatprep.subr.mxu0 0.0
    %154 = vmatpush1.msra.mxu0 %v137
    %155 = vmatprep.subr.mxu0 0.0
    %156 = vmatpush1.msra.mxu0 %v138
    %157 = vmatprep.subr.mxu0 0.0
    %158 = vmatpush1.msra.mxu0 %v139
    %159 = vmatprep.subr.mxu0 0.0
    %160 = vmatpush1.msra.mxu0 %v140
    %161 = vmatprep.subr.mxu0 0.0
    %162 = vmatpush1.msra.mxu0 %v141
    %163 = vmatprep.subr.mxu0 0.0
    %164 = vmatpush1.msra.mxu0 %v142
    %165 = vmatprep.subr.mxu0 0.0
    %166 = vmatpush1.msra.mxu0 %v143
    %167 = vmatprep.subr.mxu0 0.0
    %168 = vmatpush1.msra.mxu0 %v144
    %169 = vmatprep.subr.mxu0 0.0
    %170 = vmatpush1.msra.mxu0 %v145
    %171 = vmatprep.subr.mxu0 0.0
    %172 = vmatpush1.msra.mxu0 %v146
    %173 = vmatprep.subr.mxu0 0.0
    %174 = vmatpush1.msra.mxu0 %v147
    %175 = vmatprep.subr.mxu0 0.0
    %176 = vmatpush1.msra.mxu0 %v148
    %177 = vmatprep.subr.mxu0 0.0
    %178 = vmatpush1.msra.mxu0 %v149
    %179 = vmatprep.subr.mxu0 0.0
    %180 = vmatpush1.msra.mxu0 %v150
    %181 = vmatprep.subr.mxu0 0.0
    %182 = vmatpush1.msra.mxu0 %v151
    %183 = vmatprep.subr.mxu0 0.0
    %184 = vmatpush1.msra.mxu0 %v152
    %185 = vmatprep.subr.mxu0 0.0
    %186 = vmatpush1.msra.mxu0 0.0
    %187 = vmatprep.subr.mxu0 0.0
    %188 = vmatpush1.msra.mxu0 0.0
    %189 = vmatprep.subr.mxu0 0.0
    %190 = vmatpush1.msra.mxu0 0.0
    %191 = vmatprep.subr.mxu0 0.0
    %192 = vmatpush1.msra.mxu0 0.0
    %193 = vmatprep.subr.mxu0 0.0
    %194 = vmatpush1.msra.mxu0 0.0
    %195 = vmatprep.subr.mxu0 0.0
    %196 = vmatpush1.msra.mxu0 0.0
    %197 = vmatprep.subr.mxu0 0.0
    %198 = vmatpush1.msra.mxu0 0.0
    %199 = vmatprep.subr.mxu0 0.0
    %200 = vmatpush1.msra.mxu0 0.0
    %201 = vmatprep.subr.mxu0 0.0
    %202 = vmatpush1.msra.mxu0 0.0
    %203 = vmatprep.subr.mxu0 0.0
    %204 = vmatpush1.msra.mxu0 0.0
    %205 = vmatprep.subr.mxu0 0.0
    %206 = vmatpush1.msra.mxu0 0.0
    %207 = vmatprep.subr.mxu0 0.0
    %208 = vmatpush1.msra.mxu0 0.0
    %209 = vmatprep.subr.mxu0 0.0
    %210 = vmatpush1.msra.mxu0 0.0
    %211 = vmatprep.subr.mxu0 0.0
    %212 = vmatpush1.msra.mxu0 0.0
    %213 = vmatprep.subr.mxu0 0.0
    %214 = vmatpush1.msra.mxu0 0.0
    %215 = vmatprep.subr.mxu0 0.0
    %216 = vmatpush1.msra.mxu0 0.0
    %217 = vmatprep.mubr.f32.mxu0 0.0
    %218 = vmatmul.mubr.f32.gmra.mrb[0].mxu0 %v135
    %v219 = vpop.f32.mrb[0].mxu0
    %v220 = vadd.f32 0.0, %v219
    %v221 = vpop.f32.mrb[0].mxu0
    %222 = vmatprep.mubr.f32.mxu0 0.0
    %223 = vmatmul.mubr.f32.gmra.mrb[0].mxu0 %v136
    %v224 = vpop.f32.mrb[0].mxu0
    %v225 = vadd.f32 0.0, %v224
    %v226 = vpop.f32.mrb[0].mxu0
    %227 = vdwg.mxu0
    %v229 = vsel %vm122, %v121, 0
    %231 = vmatprep.subr.mxu0 0.0
    %232 = vmatpush1.msra.mxu0 %v220
    %233 = vmatprep.subr.mxu0 0.0
    %234 = vmatpush1.msra.mxu0 0.0
    %235 = vmatprep.subr.mxu0 0.0
    %236 = vmatpush1.msra.mxu0 0.0
    %237 = vmatprep.subr.mxu0 0.0
    %238 = vmatpush1.msra.mxu0 0.0
    %239 = vmatprep.subr.mxu0 0.0
    %240 = vmatpush1.msra.mxu0 0.0
    %241 = vmatprep.subr.mxu0 0.0
    %242 = vmatpush1.msra.mxu0 0.0
    %243 = vmatprep.subr.mxu0 0.0
    %244 = vmatpush1.msra.mxu0 0.0
    %245 = vmatprep.subr.mxu0 0.0
    %246 = vmatpush1.msra.mxu0 0.0
    %247 = vmatprep.subr.mxu0 0.0
    %248 = vmatpush1.msra.mxu0 0.0
    %249 = vmatprep.subr.mxu0 0.0
    %250 = vmatpush1.msra.mxu0 0.0
    %251 = vmatprep.subr.mxu0 0.0
    %252 = vmatpush1.msra.mxu0 0.0
    %253 = vmatprep.subr.mxu0 0.0
    %254 = vmatpush1.msra.mxu0 0.0
    %255 = vmatprep.subr.mxu0 0.0
    %256 = vmatpush1.msra.mxu0 0.0
    %257 = vmatprep.subr.mxu0 0.0
    %258 = vmatpush1.msra.mxu0 0.0
    %259 = vmatprep.subr.mxu0 0.0
    %260 = vmatpush1.msra.mxu0 0.0
    %261 = vmatprep.subr.mxu0 0.0
    %262 = vmatpush1.msra.mxu0 0.0
    %263 = vmatprep.subr.mxu0 0.0
    %264 = vmatpush1.msra.mxu0 0.0
    %265 = vmatprep.subr.mxu0 0.0
    %266 = vmatpush1.msra.mxu0 0.0
    %267 = vmatprep.subr.mxu0 0.0
    %268 = vmatpush1.msra.mxu0 0.0
    %269 = vmatprep.subr.mxu0 0.0
    %270 = vmatpush1.msra.mxu0 0.0
    %271 = vmatprep.subr.mxu0 0.0
    %272 = vmatpush1.msra.mxu0 0.0
    %273 = vmatprep.subr.mxu0 0.0
    %274 = vmatpush1.msra.mxu0 0.0
    %275 = vmatprep.subr.mxu0 0.0
    %276 = vmatpush1.msra.mxu0 0.0
    %277 = vmatprep.subr.mxu0 0.0
    %278 = vmatpush1.msra.mxu0 0.0
    %279 = vmatprep.subr.mxu0 0.0
    %280 = vmatpush1.msra.mxu0 0.0
    %281 = vmatprep.subr.mxu0 0.0
    %282 = vmatpush1.msra.mxu0 0.0
    %283 = vmatprep.subr.mxu0 0.0
    %284 = vmatpush1.msra.mxu0 0.0
    %285 = vmatprep.subr.mxu0 0.0
    %286 = vmatpush1.msra.mxu0 0.0
    %287 = vmatprep.subr.mxu0 0.0
    %288 = vmatpush1.msra.mxu0 0.0
    %289 = vmatprep.subr.mxu0 0.0
    %290 = vmatpush1.msra.mxu0 0.0
    %291 = vmatprep.subr.mxu0 0.0
    %292 = vmatpush1.msra.mxu0 0.0
    %293 = vmatprep.subr.mxu0 0.0
    %294 = vmatpush1.msra.mxu0 0.0
    %295 = vmatprep.mubr.f32.mxu0 0.0
    %296 = vmatmul.mubr.f32.gmra.mrb[0].mxu0 %v229
    %v297 = vpop.f32.mrb[0].mxu0
    %v298 = vadd.f32 0.0, %v297
    %v299 = vpop.f32.mrb[0].mxu0
    %300 = vdwg.mxu0
    %v301 = vmul.f32 %v298, %v127
    %v303 = vsel %vm122, %v129, 0
    %305 = vmatprep.subr.mxu0 0.0
    %306 = vmatpush1.msra.mxu0 %v225
    %307 = vmatprep.subr.mxu0 0.0
    %308 = vmatpush1.msra.mxu0 0.0
    %309 = vmatprep.subr.mxu0 0.0
    %310 = vmatpush1.msra.mxu0 0.0
    %311 = vmatprep.subr.mxu0 0.0
    %312 = vmatpush1.msra.mxu0 0.0
    %313 = vmatprep.subr.mxu0 0.0
    %314 = vmatpush1.msra.mxu0 0.0
    %315 = vmatprep.subr.mxu0 0.0
    %316 = vmatpush1.msra.mxu0 0.0
    %317 = vmatprep.subr.mxu0 0.0
    %318 = vmatpush1.msra.mxu0 0.0
    %319 = vmatprep.subr.mxu0 0.0
    %320 = vmatpush1.msra.mxu0 0.0
    %321 = vmatprep.subr.mxu0 0.0
    %322 = vmatpush1.msra.mxu0 0.0
    %323 = vmatprep.subr.mxu0 0.0
    %324 = vmatpush1.msra.mxu0 0.0
    %325 = vmatprep.subr.mxu0 0.0
    %326 = vmatpush1.msra.mxu0 0.0
    %327 = vmatprep.subr.mxu0 0.0
    %328 = vmatpush1.msra.mxu0 0.0
    %329 = vmatprep.subr.mxu0 0.0
    %330 = vmatpush1.msra.mxu0 0.0
    %331 = vmatprep.subr.mxu0 0.0
    %332 = vmatpush1.msra.mxu0 0.0
    %333 = vmatprep.subr.mxu0 0.0
    %334 = vmatpush1.msra.mxu0 0.0
    %335 = vmatprep.subr.mxu0 0.0
    %336 = vmatpush1.msra.mxu0 0.0
    %337 = vmatprep.subr.mxu0 0.0
    %338 = vmatpush1.msra.mxu0 0.0
    %339 = vmatprep.subr.mxu0 0.0
    %340 = vmatpush1.msra.mxu0 0.0
    %341 = vmatprep.subr.mxu0 0.0
    %342 = vmatpush1.msra.mxu0 0.0
    %343 = vmatprep.subr.mxu0 0.0
    %344 = vmatpush1.msra.mxu0 0.0
    %345 = vmatprep.subr.mxu0 0.0
    %346 = vmatpush1.msra.mxu0 0.0
    %347 = vmatprep.subr.mxu0 0.0
    %348 = vmatpush1.msra.mxu0 0.0
    %349 = vmatprep.subr.mxu0 0.0
    %350 = vmatpush1.msra.mxu0 0.0
    %351 = vmatprep.subr.mxu0 0.0
    %352 = vmatpush1.msra.mxu0 0.0
    %353 = vmatprep.subr.mxu0 0.0
    %354 = vmatpush1.msra.mxu0 0.0
    %355 = vmatprep.subr.mxu0 0.0
    %356 = vmatpush1.msra.mxu0 0.0
    %357 = vmatprep.subr.mxu0 0.0
    %358 = vmatpush1.msra.mxu0 0.0
    %359 = vmatprep.subr.mxu0 0.0
    %360 = vmatpush1.msra.mxu0 0.0
    %361 = vmatprep.subr.mxu0 0.0
    %362 = vmatpush1.msra.mxu0 0.0
    %363 = vmatprep.subr.mxu0 0.0
    %364 = vmatpush1.msra.mxu0 0.0
    %365 = vmatprep.subr.mxu0 0.0
    %366 = vmatpush1.msra.mxu0 0.0
    %367 = vmatprep.subr.mxu0 0.0
    %368 = vmatpush1.msra.mxu0 0.0
    %369 = vmatprep.mubr.f32.mxu0 0.0
    %370 = vmatmul.mubr.f32.gmra.mrb[0].mxu0 %v303
    %v371 = vpop.f32.mrb[0].mxu0
    %v372 = vadd.f32 0.0, %v371
    %v373 = vpop.f32.mrb[0].mxu0
    %374 = vdwg.mxu0
    %v375 = vmul.f32 %v372, %v134
    %v376 = vld [vmem:[%s4] sm:$0x1]
    %v378 = vlaneseq
    %v379 = vshrl.u32 %v378, 7
    %v380 = vsub.s32 0, %v379
    %v381 = vrot.slane %v376, %v380
    %v383 = vadd.f32 %v301, %v381
    %v384 = vadd.f32 %v375, %v381
    %v385 = vmax.f32 %v383, 0.0
    %v386 = vmax.f32 %v384, 0.0
    %v387 = vmul.f32 %v114, %v385
    %v388 = vmul.f32 %v119, %v386
    %v389 = vld [vmem:[#allocation7] sm:$0xff]
    %v390 = vld [vmem:[#allocation7 + $0x8] sm:$0xff]
    %v391 = vld [vmem:[#allocation7 + $0x10] sm:$0xff]
    %v392 = vld [vmem:[#allocation7 + $0x18] sm:$0xff]
    %v393 = vld [vmem:[#allocation7 + $0x20] sm:$0xff]
    %v394 = vld [vmem:[#allocation7 + $0x28] sm:$0xff]
    %v395 = vld [vmem:[#allocation7 + $0x30] sm:$0xff]
    %v396 = vld [vmem:[#allocation7 + $0x38] sm:$0xff]
    %v397 = vld [vmem:[#allocation7 + $0x40] sm:$0xff]
    %v398 = vld [vmem:[#allocation7 + $0x48] sm:$0xff]
    %v399 = vld [vmem:[#allocation7 + $0x50] sm:$0xff]
    %v400 = vld [vmem:[#allocation7 + $0x58] sm:$0xff]
    %v401 = vld [vmem:[#allocation7 + $0x60] sm:$0xff]
    %v402 = vld [vmem:[#allocation7 + $0x68] sm:$0xff]
    %v403 = vld [vmem:[#allocation7 + $0x70] sm:$0xff]
    %v404 = vld [vmem:[#allocation7 + $0x78] sm:$0xff]
    %405 = vmatprep.subr.mxu0 0.0
    %406 = vmatpush1.msra.mxu0 %v389
    %407 = vmatprep.subr.mxu0 0.0
    %408 = vmatpush1.msra.mxu0 %v390
    %409 = vmatprep.subr.mxu0 0.0
    %410 = vmatpush1.msra.mxu0 %v391
    %411 = vmatprep.subr.mxu0 0.0
    %412 = vmatpush1.msra.mxu0 %v392
    %413 = vmatprep.subr.mxu0 0.0
    %414 = vmatpush1.msra.mxu0 %v393
    %415 = vmatprep.subr.mxu0 0.0
    %416 = vmatpush1.msra.mxu0 %v394
    %417 = vmatprep.subr.mxu0 0.0
    %418 = vmatpush1.msra.mxu0 %v395
    %419 = vmatprep.subr.mxu0 0.0
    %420 = vmatpush1.msra.mxu0 %v396
    %421 = vmatprep.subr.mxu0 0.0
    %422 = vmatpush1.msra.mxu0 %v397
    %423 = vmatprep.subr.mxu0 0.0
    %424 = vmatpush1.msra.mxu0 %v398
    %425 = vmatprep.subr.mxu0 0.0
    %426 = vmatpush1.msra.mxu0 %v399
    %427 = vmatprep.subr.mxu0 0.0
    %428 = vmatpush1.msra.mxu0 %v400
    %429 = vmatprep.subr.mxu0 0.0
    %430 = vmatpush1.msra.mxu0 %v401
    %431 = vmatprep.subr.mxu0 0.0
    %432 = vmatpush1.msra.mxu0 %v402
    %433 = vmatprep.subr.mxu0 0.0
    %434 = vmatpush1.msra.mxu0 %v403
    %435 = vmatprep.subr.mxu0 0.0
    %436 = vmatpush1.msra.mxu0 %v404
    %437 = vmatprep.subr.mxu0 0.0
    %438 = vmatpush1.msra.mxu0 0.0
    %439 = vmatprep.subr.mxu0 0.0
    %440 = vmatpush1.msra.mxu0 0.0
    %441 = vmatprep.subr.mxu0 0.0
    %442 = vmatpush1.msra.mxu0 0.0
    %443 = vmatprep.subr.mxu0 0.0
    %444 = vmatpush1.msra.mxu0 0.0
    %445 = vmatprep.subr.mxu0 0.0
    %446 = vmatpush1.msra.mxu0 0.0
    %447 = vmatprep.subr.mxu0 0.0
    %448 = vmatpush1.msra.mxu0 0.0
    %449 = vmatprep.subr.mxu0 0.0
    %450 = vmatpush1.msra.mxu0 0.0
    %451 = vmatprep.subr.mxu0 0.0
    %452 = vmatpush1.msra.mxu0 0.0
    %453 = vmatprep.subr.mxu0 0.0
    %454 = vmatpush1.msra.mxu0 0.0
    %455 = vmatprep.subr.mxu0 0.0
    %456 = vmatpush1.msra.mxu0 0.0
    %457 = vmatprep.subr.mxu0 0.0
    %458 = vmatpush1.msra.mxu0 0.0
    %459 = vmatprep.subr.mxu0 0.0
    %460 = vmatpush1.msra.mxu0 0.0
    %461 = vmatprep.subr.mxu0 0.0
    %462 = vmatpush1.msra.mxu0 0.0
    %463 = vmatprep.subr.mxu0 0.0
    %464 = vmatpush1.msra.mxu0 0.0
    %465 = vmatprep.subr.mxu0 0.0
    %466 = vmatpush1.msra.mxu0 0.0
    %467 = vmatprep.subr.mxu0 0.0
    %468 = vmatpush1.msra.mxu0 0.0
    %469 = vmatprep.mubr.f32.mxu0 0.0
    %470 = vmatmul.mubr.f32.gmra.mrb[0].mxu0 %v387
    %v471 = vpop.f32.mrb[0].mxu0
    %v472 = vadd.f32 0.0, %v471
    %v473 = vpop.f32.mrb[0].mxu0
    %474 = vmatprep.mubr.f32.mxu0 0.0
    %475 = vmatmul.mubr.f32.gmra.mrb[0].mxu0 %v388
    %v476 = vpop.f32.mrb[0].mxu0
    %v477 = vadd.f32 0.0, %v476
    %v478 = vpop.f32.mrb[0].mxu0
    %479 = vdwg.mxu0
    %480 = vmatprep.subr.mxu0 0.0
    %481 = vmatpush1.msra.mxu0 %v472
    %482 = vmatprep.subr.mxu0 0.0
    %483 = vmatpush1.msra.mxu0 0.0
    %484 = vmatprep.subr.mxu0 0.0
    %485 = vmatpush1.msra.mxu0 0.0
    %486 = vmatprep.subr.mxu0 0.0
    %487 = vmatpush1.msra.mxu0 0.0
    %488 = vmatprep.subr.mxu0 0.0
    %489 = vmatpush1.msra.mxu0 0.0
    %490 = vmatprep.subr.mxu0 0.0
    %491 = vmatpush1.msra.mxu0 0.0
    %492 = vmatprep.subr.mxu0 0.0
    %493 = vmatpush1.msra.mxu0 0.0
    %494 = vmatprep.subr.mxu0 0.0
    %495 = vmatpush1.msra.mxu0 0.0
    %496 = vmatprep.subr.mxu0 0.0
    %497 = vmatpush1.msra.mxu0 0.0
    %498 = vmatprep.subr.mxu0 0.0
    %499 = vmatpush1.msra.mxu0 0.0
    %500 = vmatprep.subr.mxu0 0.0
    %501 = vmatpush1.msra.mxu0 0.0
    %502 = vmatprep.subr.mxu0 0.0
    %503 = vmatpush1.msra.mxu0 0.0
    %504 = vmatprep.subr.mxu0 0.0
    %505 = vmatpush1.msra.mxu0 0.0
    %506 = vmatprep.subr.mxu0 0.0
    %507 = vmatpush1.msra.mxu0 0.0
    %508 = vmatprep.subr.mxu0 0.0
    %509 = vmatpush1.msra.mxu0 0.0
    %510 = vmatprep.subr.mxu0 0.0
    %511 = vmatpush1.msra.mxu0 0.0
    %512 = vmatprep.subr.mxu0 0.0
    %513 = vmatpush1.msra.mxu0 0.0
    %514 = vmatprep.subr.mxu0 0.0
    %515 = vmatpush1.msra.mxu0 0.0
    %516 = vmatprep.subr.mxu0 0.0
    %517 = vmatpush1.msra.mxu0 0.0
    %518 = vmatprep.subr.mxu0 0.0
    %519 = vmatpush1.msra.mxu0 0.0
    %520 = vmatprep.subr.mxu0 0.0
    %521 = vmatpush1.msra.mxu0 0.0
    %522 = vmatprep.subr.mxu0 0.0
    %523 = vmatpush1.msra.mxu0 0.0
    %524 = vmatprep.subr.mxu0 0.0
    %525 = vmatpush1.msra.mxu0 0.0
    %526 = vmatprep.subr.mxu0 0.0
    %527 = vmatpush1.msra.mxu0 0.0
    %528 = vmatprep.subr.mxu0 0.0
    %529 = vmatpush1.msra.mxu0 0.0
    %530 = vmatprep.subr.mxu0 0.0
    %531 = vmatpush1.msra.mxu0 0.0
    %532 = vmatprep.subr.mxu0 0.0
    %533 = vmatpush1.msra.mxu0 0.0
    %534 = vmatprep.subr.mxu0 0.0
    %535 = vmatpush1.msra.mxu0 0.0
    %536 = vmatprep.subr.mxu0 0.0
    %537 = vmatpush1.msra.mxu0 0.0
    %538 = vmatprep.subr.mxu0 0.0
    %539 = vmatpush1.msra.mxu0 0.0
    %540 = vmatprep.subr.mxu0 0.0
    %541 = vmatpush1.msra.mxu0 0.0
    %542 = vmatprep.subr.mxu0 0.0
    %543 = vmatpush1.msra.mxu0 0.0
    %544 = vmatprep.mubr.f32.mxu0 0.0
    %545 = vmatmul.mubr.f32.gmra.mrb[0].mxu0 %v229
    %v546 = vpop.f32.mrb[0].mxu0
    %v547 = vadd.f32 0.0, %v546
    %v548 = vpop.f32.mrb[0].mxu0
    %549 = vdwg.mxu0
    %v550 = vmul.f32 %v547, %v127
    %551 = vmatprep.subr.mxu0 0.0
    %552 = vmatpush1.msra.mxu0 %v477
    %553 = vmatprep.subr.mxu0 0.0
    %554 = vmatpush1.msra.mxu0 0.0
    %555 = vmatprep.subr.mxu0 0.0
    %556 = vmatpush1.msra.mxu0 0.0
    %557 = vmatprep.subr.mxu0 0.0
    %558 = vmatpush1.msra.mxu0 0.0
    %559 = vmatprep.subr.mxu0 0.0
    %560 = vmatpush1.msra.mxu0 0.0
    %561 = vmatprep.subr.mxu0 0.0
    %562 = vmatpush1.msra.mxu0 0.0
    %563 = vmatprep.subr.mxu0 0.0
    %564 = vmatpush1.msra.mxu0 0.0
    %565 = vmatprep.subr.mxu0 0.0
    %566 = vmatpush1.msra.mxu0 0.0
    %567 = vmatprep.subr.mxu0 0.0
    %568 = vmatpush1.msra.mxu0 0.0
    %569 = vmatprep.subr.mxu0 0.0
    %570 = vmatpush1.msra.mxu0 0.0
    %571 = vmatprep.subr.mxu0 0.0
    %572 = vmatpush1.msra.mxu0 0.0
    %573 = vmatprep.subr.mxu0 0.0
    %574 = vmatpush1.msra.mxu0 0.0
    %575 = vmatprep.subr.mxu0 0.0
    %576 = vmatpush1.msra.mxu0 0.0
    %577 = vmatprep.subr.mxu0 0.0
    %578 = vmatpush1.msra.mxu0 0.0
    %579 = vmatprep.subr.mxu0 0.0
    %580 = vmatpush1.msra.mxu0 0.0
    %581 = vmatprep.subr.mxu0 0.0
    %582 = vmatpush1.msra.mxu0 0.0
    %583 = vmatprep.subr.mxu0 0.0
    %584 = vmatpush1.msra.mxu0 0.0
    %585 = vmatprep.subr.mxu0 0.0
    %586 = vmatpush1.msra.mxu0 0.0
    %587 = vmatprep.subr.mxu0 0.0
    %588 = vmatpush1.msra.mxu0 0.0
    %589 = vmatprep.subr.mxu0 0.0
    %590 = vmatpush1.msra.mxu0 0.0
    %591 = vmatprep.subr.mxu0 0.0
    %592 = vmatpush1.msra.mxu0 0.0
    %593 = vmatprep.subr.mxu0 0.0
    %594 = vmatpush1.msra.mxu0 0.0
    %595 = vmatprep.subr.mxu0 0.0
    %596 = vmatpush1.msra.mxu0 0.0
    %597 = vmatprep.subr.mxu0 0.0
    %598 = vmatpush1.msra.mxu0 0.0
    %599 = vmatprep.subr.mxu0 0.0
    %600 = vmatpush1.msra.mxu0 0.0
    %601 = vmatprep.subr.mxu0 0.0
    %602 = vmatpush1.msra.mxu0 0.0
    %603 = vmatprep.subr.mxu0 0.0
    %604 = vmatpush1.msra.mxu0 0.0
    %605 = vmatprep.subr.mxu0 0.0
    %606 = vmatpush1.msra.mxu0 0.0
    %607 = vmatprep.subr.mxu0 0.0
    %608 = vmatpush1.msra.mxu0 0.0
    %609 = vmatprep.subr.mxu0 0.0
    %610 = vmatpush1.msra.mxu0 0.0
    %611 = vmatprep.subr.mxu0 0.0
    %612 = vmatpush1.msra.mxu0 0.0
    %613 = vmatprep.subr.mxu0 0.0
    %614 = vmatpush1.msra.mxu0 0.0
    %615 = vmatprep.mubr.f32.mxu0 0.0
    %616 = vmatmul.mubr.f32.gmra.mrb[0].mxu0 %v303
    %v617 = vpop.f32.mrb[0].mxu0
    %v618 = vadd.f32 0.0, %v617
    %v619 = vpop.f32.mrb[0].mxu0
    %620 = vdwg.mxu0
    %v621 = vmul.f32 %v618, %v134
    %v622 = vld [vmem:[%s6] sm:$0x1]
    %v624 = vlaneseq
    %v625 = vshrl.u32 %v624, 7
    %v626 = vsub.s32 0, %v625
    %v627 = vrot.slane %v622, %v626
    %v629 = vadd.f32 %v550, %v627
    %v630 = vadd.f32 %v621, %v627
    %v631 = vmax.f32 %v629, 0.0
    %v632 = vmax.f32 %v630, 0.0
    %v633 = vmul.f32 %v114, %v631
    %v634 = vmul.f32 %v119, %v632
    %v635 = vld [vmem:[#allocation8] sm:$0xff]
    %v636 = vld [vmem:[#allocation8 + $0x8] sm:$0xff]
    %v637 = vld [vmem:[#allocation8 + $0x10] sm:$0xff]
    %v638 = vld [vmem:[#allocation8 + $0x18] sm:$0xff]
    %v639 = vld [vmem:[#allocation8 + $0x20] sm:$0xff]
    %v640 = vld [vmem:[#allocation8 + $0x28] sm:$0xff]
    %v641 = vld [vmem:[#allocation8 + $0x30] sm:$0xff]
    %v642 = vld [vmem:[#allocation8 + $0x38] sm:$0xff]
    %v643 = vld [vmem:[#allocation8 + $0x40] sm:$0xff]
    %v644 = vld [vmem:[#allocation8 + $0x48] sm:$0xff]
    %v645 = vld [vmem:[#allocation8 + $0x50] sm:$0xff]
    %v646 = vld [vmem:[#allocation8 + $0x58] sm:$0xff]
    %v647 = vld [vmem:[#allocation8 + $0x60] sm:$0xff]
    %v648 = vld [vmem:[#allocation8 + $0x68] sm:$0xff]
    %v649 = vld [vmem:[#allocation8 + $0x70] sm:$0xff]
    %v650 = vld [vmem:[#allocation8 + $0x78] sm:$0xff]
    %651 = vmatprep.subr.mxu0 0.0
    %652 = vmatpush1.msra.mxu0 %v635
    %653 = vmatprep.subr.mxu0 0.0
    %654 = vmatpush1.msra.mxu0 %v636
    %655 = vmatprep.subr.mxu0 0.0
    %656 = vmatpush1.msra.mxu0 %v637
    %657 = vmatprep.subr.mxu0 0.0
    %658 = vmatpush1.msra.mxu0 %v638
    %659 = vmatprep.subr.mxu0 0.0
    %660 = vmatpush1.msra.mxu0 %v639
    %661 = vmatprep.subr.mxu0 0.0
    %662 = vmatpush1.msra.mxu0 %v640
    %663 = vmatprep.subr.mxu0 0.0
    %664 = vmatpush1.msra.mxu0 %v641
    %665 = vmatprep.subr.mxu0 0.0
    %666 = vmatpush1.msra.mxu0 %v642
    %667 = vmatprep.subr.mxu0 0.0
    %668 = vmatpush1.msra.mxu0 %v643
    %669 = vmatprep.subr.mxu0 0.0
    %670 = vmatpush1.msra.mxu0 %v644
    %671 = vmatprep.subr.mxu0 0.0
    %672 = vmatpush1.msra.mxu0 %v645
    %673 = vmatprep.subr.mxu0 0.0
    %674 = vmatpush1.msra.mxu0 %v646
    %675 = vmatprep.subr.mxu0 0.0
    %676 = vmatpush1.msra.mxu0 %v647
    %677 = vmatprep.subr.mxu0 0.0
    %678 = vmatpush1.msra.mxu0 %v648
    %679 = vmatprep.subr.mxu0 0.0
    %680 = vmatpush1.msra.mxu0 %v649
    %681 = vmatprep.subr.mxu0 0.0
    %682 = vmatpush1.msra.mxu0 %v650
    %683 = vmatprep.subr.mxu0 0.0
    %684 = vmatpush1.msra.mxu0 0.0
    %685 = vmatprep.subr.mxu0 0.0
    %686 = vmatpush1.msra.mxu0 0.0
    %687 = vmatprep.subr.mxu0 0.0
    %688 = vmatpush1.msra.mxu0 0.0
    %689 = vmatprep.subr.mxu0 0.0
    %690 = vmatpush1.msra.mxu0 0.0
    %691 = vmatprep.subr.mxu0 0.0
    %692 = vmatpush1.msra.mxu0 0.0
    %693 = vmatprep.subr.mxu0 0.0
    %694 = vmatpush1.msra.mxu0 0.0
    %695 = vmatprep.subr.mxu0 0.0
    %696 = vmatpush1.msra.mxu0 0.0
    %697 = vmatprep.subr.mxu0 0.0
    %698 = vmatpush1.msra.mxu0 0.0
    %699 = vmatprep.subr.mxu0 0.0
    %700 = vmatpush1.msra.mxu0 0.0
    %701 = vmatprep.subr.mxu0 0.0
    %702 = vmatpush1.msra.mxu0 0.0
    %703 = vmatprep.subr.mxu0 0.0
    %704 = vmatpush1.msra.mxu0 0.0
    %705 = vmatprep.subr.mxu0 0.0
    %706 = vmatpush1.msra.mxu0 0.0
    %707 = vmatprep.subr.mxu0 0.0
    %708 = vmatpush1.msra.mxu0 0.0
    %709 = vmatprep.subr.mxu0 0.0
    %710 = vmatpush1.msra.mxu0 0.0
    %711 = vmatprep.subr.mxu0 0.0
    %712 = vmatpush1.msra.mxu0 0.0
    %713 = vmatprep.subr.mxu0 0.0
    %714 = vmatpush1.msra.mxu0 0.0
    %715 = vmatprep.mubr.f32.mxu0 0.0
    %716 = vmatmul.mubr.f32.gmra.mrb[0].mxu0 %v633
    %v717 = vpop.f32.mrb[0].mxu0
    %v718 = vadd.f32 0.0, %v717
    %v719 = vpop.f32.mrb[0].mxu0
    %720 = vmatprep.mubr.f32.mxu0 0.0
    %721 = vmatmul.mubr.f32.gmra.mrb[0].mxu0 %v634
    %v722 = vpop.f32.mrb[0].mxu0
    %v723 = vadd.f32 0.0, %v722
    %v724 = vpop.f32.mrb[0].mxu0
    %725 = vdwg.mxu0
    %726 = vmatprep.subr.mxu0 0.0
    %727 = vmatpush1.msra.mxu0 %v718
    %728 = vmatprep.subr.mxu0 0.0
    %729 = vmatpush1.msra.mxu0 0.0
    %730 = vmatprep.subr.mxu0 0.0
    %731 = vmatpush1.msra.mxu0 0.0
    %732 = vmatprep.subr.mxu0 0.0
    %733 = vmatpush1.msra.mxu0 0.0
    %734 = vmatprep.subr.mxu0 0.0
    %735 = vmatpush1.msra.mxu0 0.0
    %736 = vmatprep.subr.mxu0 0.0
    %737 = vmatpush1.msra.mxu0 0.0
    %738 = vmatprep.subr.mxu0 0.0
    %739 = vmatpush1.msra.mxu0 0.0
    %740 = vmatprep.subr.mxu0 0.0
    %741 = vmatpush1.msra.mxu0 0.0
    %742 = vmatprep.subr.mxu0 0.0
    %743 = vmatpush1.msra.mxu0 0.0
    %744 = vmatprep.subr.mxu0 0.0
    %745 = vmatpush1.msra.mxu0 0.0
    %746 = vmatprep.subr.mxu0 0.0
    %747 = vmatpush1.msra.mxu0 0.0
    %748 = vmatprep.subr.mxu0 0.0
    %749 = vmatpush1.msra.mxu0 0.0
    %750 = vmatprep.subr.mxu0 0.0
    %751 = vmatpush1.msra.mxu0 0.0
    %752 = vmatprep.subr.mxu0 0.0
    %753 = vmatpush1.msra.mxu0 0.0
    %754 = vmatprep.subr.mxu0 0.0
    %755 = vmatpush1.msra.mxu0 0.0
    %756 = vmatprep.subr.mxu0 0.0
    %757 = vmatpush1.msra.mxu0 0.0
    %758 = vmatprep.subr.mxu0 0.0
    %759 = vmatpush1.msra.mxu0 0.0
    %760 = vmatprep.subr.mxu0 0.0
    %761 = vmatpush1.msra.mxu0 0.0
    %762 = vmatprep.subr.mxu0 0.0
    %763 = vmatpush1.msra.mxu0 0.0
    %764 = vmatprep.subr.mxu0 0.0
    %765 = vmatpush1.msra.mxu0 0.0
    %766 = vmatprep.subr.mxu0 0.0
    %767 = vmatpush1.msra.mxu0 0.0
    %768 = vmatprep.subr.mxu0 0.0
    %769 = vmatpush1.msra.mxu0 0.0
    %770 = vmatprep.subr.mxu0 0.0
    %771 = vmatpush1.msra.mxu0 0.0
    %772 = vmatprep.subr.mxu0 0.0
    %773 = vmatpush1.msra.mxu0 0.0
    %774 = vmatprep.subr.mxu0 0.0
    %775 = vmatpush1.msra.mxu0 0.0
    %776 = vmatprep.subr.mxu0 0.0
    %777 = vmatpush1.msra.mxu0 0.0
    %778 = vmatprep.subr.mxu0 0.0
    %779 = vmatpush1.msra.mxu0 0.0
    %780 = vmatprep.subr.mxu0 0.0
    %781 = vmatpush1.msra.mxu0 0.0
    %782 = vmatprep.subr.mxu0 0.0
    %783 = vmatpush1.msra.mxu0 0.0
    %784 = vmatprep.subr.mxu0 0.0
    %785 = vmatpush1.msra.mxu0 0.0
    %786 = vmatprep.subr.mxu0 0.0
    %787 = vmatpush1.msra.mxu0 0.0
    %788 = vmatprep.subr.mxu0 0.0
    %789 = vmatpush1.msra.mxu0 0.0
    %790 = vmatprep.mubr.f32.mxu0 0.0
    %791 = vmatmul.mubr.f32.gmra.mrb[0].mxu0 %v229
    %v792 = vpop.f32.mrb[0].mxu0
    %v793 = vadd.f32 0.0, %v792
    %v794 = vpop.f32.mrb[0].mxu0
    %795 = vdwg.mxu0
    %v796 = vmul.f32 %v793, %v127
    %797 = vmatprep.subr.mxu0 0.0
    %798 = vmatpush1.msra.mxu0 %v723
    %799 = vmatprep.subr.mxu0 0.0
    %800 = vmatpush1.msra.mxu0 0.0
    %801 = vmatprep.subr.mxu0 0.0
    %802 = vmatpush1.msra.mxu0 0.0
    %803 = vmatprep.subr.mxu0 0.0
    %804 = vmatpush1.msra.mxu0 0.0
    %805 = vmatprep.subr.mxu0 0.0
    %806 = vmatpush1.msra.mxu0 0.0
    %807 = vmatprep.subr.mxu0 0.0
    %808 = vmatpush1.msra.mxu0 0.0
    %809 = vmatprep.subr.mxu0 0.0
    %810 = vmatpush1.msra.mxu0 0.0
    %811 = vmatprep.subr.mxu0 0.0
    %812 = vmatpush1.msra.mxu0 0.0
    %813 = vmatprep.subr.mxu0 0.0
    %814 = vmatpush1.msra.mxu0 0.0
    %815 = vmatprep.subr.mxu0 0.0
    %816 = vmatpush1.msra.mxu0 0.0
    %817 = vmatprep.subr.mxu0 0.0
    %818 = vmatpush1.msra.mxu0 0.0
    %819 = vmatprep.subr.mxu0 0.0
    %820 = vmatpush1.msra.mxu0 0.0
    %821 = vmatprep.subr.mxu0 0.0
    %822 = vmatpush1.msra.mxu0 0.0
    %823 = vmatprep.subr.mxu0 0.0
    %824 = vmatpush1.msra.mxu0 0.0
    %825 = vmatprep.subr.mxu0 0.0
    %826 = vmatpush1.msra.mxu0 0.0
    %827 = vmatprep.subr.mxu0 0.0
    %828 = vmatpush1.msra.mxu0 0.0
    %829 = vmatprep.subr.mxu0 0.0
    %830 = vmatpush1.msra.mxu0 0.0
    %831 = vmatprep.subr.mxu0 0.0
    %832 = vmatpush1.msra.mxu0 0.0
    %833 = vmatprep.subr.mxu0 0.0
    %834 = vmatpush1.msra.mxu0 0.0
    %835 = vmatprep.subr.mxu0 0.0
    %836 = vmatpush1.msra.mxu0 0.0
    %837 = vmatprep.subr.mxu0 0.0
    %838 = vmatpush1.msra.mxu0 0.0
    %839 = vmatprep.subr.mxu0 0.0
    %840 = vmatpush1.msra.mxu0 0.0
    %841 = vmatprep.subr.mxu0 0.0
    %842 = vmatpush1.msra.mxu0 0.0
    %843 = vmatprep.subr.mxu0 0.0
    %844 = vmatpush1.msra.mxu0 0.0
    %845 = vmatprep.subr.mxu0 0.0
    %846 = vmatpush1.msra.mxu0 0.0
    %847 = vmatprep.subr.mxu0 0.0
    %848 = vmatpush1.msra.mxu0 0.0
    %849 = vmatprep.subr.mxu0 0.0
    %850 = vmatpush1.msra.mxu0 0.0
    %851 = vmatprep.subr.mxu0 0.0
    %852 = vmatpush1.msra.mxu0 0.0
    %853 = vmatprep.subr.mxu0 0.0
    %854 = vmatpush1.msra.mxu0 0.0
    %855 = vmatprep.subr.mxu0 0.0
    %856 = vmatpush1.msra.mxu0 0.0
    %857 = vmatprep.subr.mxu0 0.0
    %858 = vmatpush1.msra.mxu0 0.0
    %859 = vmatprep.subr.mxu0 0.0
    %860 = vmatpush1.msra.mxu0 0.0
    %861 = vmatprep.mubr.f32.mxu0 0.0
    %862 = vmatmul.mubr.f32.gmra.mrb[0].mxu0 %v303
    %v863 = vpop.f32.mrb[0].mxu0
    %v864 = vadd.f32 0.0, %v863
    %v865 = vpop.f32.mrb[0].mxu0
    %866 = vdwg.mxu0
    %v867 = vmul.f32 %v864, %v134
    %v868 = vld [vmem:[%s8] sm:$0x1]
    %v870 = vlaneseq
    %v871 = vshrl.u32 %v870, 7
    %v872 = vsub.s32 0, %v871
    %v873 = vrot.slane %v868, %v872
    %v875 = vadd.f32 %v796, %v873
    %v876 = vadd.f32 %v867, %v873
    %v877 = vmax.f32 %v875, 0.0
    %v878 = vmax.f32 %v876, 0.0
    %879 = vset.pattern.permute.xlu0 1
    %880 = vperm.xlu0 %879, %v109
    %v881 = vpop.permute.xlu0 %880
    %883 = vset.pattern.permute.xlu0 1
    %884 = vperm.xlu0 %883, %v110
    %v885 = vpop.permute.xlu0 %884
    %v887 = vmul.f32 %v881, %v877
    %v888 = vmul.f32 %v885, %v878
    %v889 = vrot.slane %v887, 4
    %v890 = vadd.f32 %v887, %v889
    %v891 = vrot.slane %v890, 2
    %v892 = vadd.f32 %v890, %v891
    %v893 = vrot.slane %v892, 1
    %v894 = vadd.f32 %v892, %v893
    %895 = vmatprep.subr.mxu0 0.0
    %896 = vmatpush1.xpose.msra.mxu0 %v107
    %897 = vmatprep.subr.mxu0 0.0
    %898 = vmatpush1.xpose.msra.mxu0 0.0
    %899 = vmatprep.subr.mxu0 0.0
    %900 = vmatpush1.xpose.msra.mxu0 0.0
    %901 = vmatprep.subr.mxu0 0.0
    %902 = vmatpush1.xpose.msra.mxu0 0.0
    %903 = vmatprep.subr.mxu0 0.0
    %904 = vmatpush1.xpose.msra.mxu0 0.0
    %905 = vmatprep.subr.mxu0 0.0
    %906 = vmatpush1.xpose.msra.mxu0 0.0
    %907 = vmatprep.subr.mxu0 0.0
    %908 = vmatpush1.xpose.msra.mxu0 0.0
    %909 = vmatprep.subr.mxu0 0.0
    %910 = vmatpush1.xpose.msra.mxu0 0.0
    %911 = vmatprep.subr.mxu0 0.0
    %912 = vmatpush1.xpose.msra.mxu0 0.0
    %913 = vmatprep.subr.mxu0 0.0
    %914 = vmatpush1.xpose.msra.mxu0 0.0
    %915 = vmatprep.subr.mxu0 0.0
    %916 = vmatpush1.xpose.msra.mxu0 0.0
    %917 = vmatprep.subr.mxu0 0.0
    %918 = vmatpush1.xpose.msra.mxu0 0.0
    %919 = vmatprep.subr.mxu0 0.0
    %920 = vmatpush1.xpose.msra.mxu0 0.0
    %921 = vmatprep.subr.mxu0 0.0
    %922 = vmatpush1.xpose.msra.mxu0 0.0
    %923 = vmatprep.subr.mxu0 0.0
    %924 = vmatpush1.xpose.msra.mxu0 0.0
    %925 = vmatprep.subr.mxu0 0.0
    %926 = vmatpush1.xpose.msra.mxu0 0.0
    %927 = vmatprep.subr.mxu0 0.0
    %928 = vmatpush1.xpose.msra.mxu0 0.0
    %929 = vmatprep.subr.mxu0 0.0
    %930 = vmatpush1.xpose.msra.mxu0 0.0
    %931 = vmatprep.subr.mxu0 0.0
    %932 = vmatpush1.xpose.msra.mxu0 0.0
    %933 = vmatprep.subr.mxu0 0.0
    %934 = vmatpush1.xpose.msra.mxu0 0.0
    %935 = vmatprep.subr.mxu0 0.0
    %936 = vmatpush1.xpose.msra.mxu0 0.0
    %937 = vmatprep.subr.mxu0 0.0
    %938 = vmatpush1.xpose.msra.mxu0 0.0
    %939 = vmatprep.subr.mxu0 0.0
    %940 = vmatpush1.xpose.msra.mxu0 0.0
    %941 = vmatprep.subr.mxu0 0.0
    %942 = vmatpush1.xpose.msra.mxu0 0.0
    %943 = vmatprep.subr.mxu0 0.0
    %944 = vmatpush1.xpose.msra.mxu0 0.0
    %945 = vmatprep.subr.mxu0 0.0
    %946 = vmatpush1.xpose.msra.mxu0 0.0
    %947 = vmatprep.subr.mxu0 0.0
    %948 = vmatpush1.xpose.msra.mxu0 0.0
    %949 = vmatprep.subr.mxu0 0.0
    %950 = vmatpush1.xpose.msra.mxu0 0.0
    %951 = vmatprep.subr.mxu0 0.0
    %952 = vmatpush1.xpose.msra.mxu0 0.0
    %953 = vmatprep.subr.mxu0 0.0
    %954 = vmatpush1.xpose.msra.mxu0 0.0
    %955 = vmatprep.subr.mxu0 0.0
    %956 = vmatpush1.xpose.msra.mxu0 0.0
    %957 = vmatprep.subr.mxu0 0.0
    %958 = vmatpush1.xpose.msra.mxu0 0.0
    %959 = vmatprep.mubr.f32.mxu0 0.0
    %960 = vmatmul.mubr.f32.gmra.mrb[0].mxu0 %v894
    %v961 = vpop.f32.mrb[0].mxu0
    %v962 = vadd.f32 0.0, %v961
    %v963 = vpop.f32.mrb[0].mxu0
    %964 = vdwg.mxu0
    %vm965 = vcmask 57344
    %v966 = vsel %vm965, %v962, -inf
    %967 = vmax.xlane.f32.xlu0 %v966
    %v968 = vpop.xlane.xlu0 %967
    %v969 = vsub.f32 %v962, %v968
    %v970 = vmul.f32 %v969, 1.442695
    %v971 = vpow.pop %v970
    %v972 = vsel %vm965, %v971, 0.0
    %973 = vadd.xlane.f32.xlu0 %v972
    %v974 = vpop.xlane.xlu0 %973
    %v975 = vrcp.pop %v974
    %v976 = vmul.f32 %v971, %v975
    %v978 = vsel %vm122, %v976, 0
    %980 = vmatprep.subr.mxu0 0.0
    %981 = vmatpush1.msra.mxu0 %v107
    %982 = vmatprep.subr.mxu0 0.0
    %983 = vmatpush1.msra.mxu0 0.0
    %984 = vmatprep.subr.mxu0 0.0
    %985 = vmatpush1.msra.mxu0 0.0
    %986 = vmatprep.subr.mxu0 0.0
    %987 = vmatpush1.msra.mxu0 0.0
    %988 = vmatprep.subr.mxu0 0.0
    %989 = vmatpush1.msra.mxu0 0.0
    %990 = vmatprep.subr.mxu0 0.0
    %991 = vmatpush1.msra.mxu0 0.0
    %992 = vmatprep.subr.mxu0 0.0
    %993 = vmatpush1.msra.mxu0 0.0
    %994 = vmatprep.subr.mxu0 0.0
    %995 = vmatpush1.msra.mxu0 0.0
    %996 = vmatprep.subr.mxu0 0.0
    %997 = vmatpush1.msra.mxu0 0.0
    %998 = vmatprep.subr.mxu0 0.0
    %999 = vmatpush1.msra.mxu0 0.0
    %1000 = vmatprep.subr.mxu0 0.0
    %1001 = vmatpush1.msra.mxu0 0.0
    %1002 = vmatprep.subr.mxu0 0.0
    %1003 = vmatpush1.msra.mxu0 0.0
    %1004 = vmatprep.subr.mxu0 0.0
    %1005 = vmatpush1.msra.mxu0 0.0
    %1006 = vmatprep.subr.mxu0 0.0
    %1007 = vmatpush1.msra.mxu0 0.0
    %1008 = vmatprep.subr.mxu0 0.0
    %1009 = vmatpush1.msra.mxu0 0.0
    %1010 = vmatprep.subr.mxu0 0.0
    %1011 = vmatpush1.msra.mxu0 0.0
    %1012 = vmatprep.subr.mxu0 0.0
    %1013 = vmatpush1.msra.mxu0 0.0
    %1014 = vmatprep.subr.mxu0 0.0
    %1015 = vmatpush1.msra.mxu0 0.0
    %1016 = vmatprep.subr.mxu0 0.0
    %1017 = vmatpush1.msra.mxu0 0.0
    %1018 = vmatprep.subr.mxu0 0.0
    %1019 = vmatpush1.msra.mxu0 0.0
    %1020 = vmatprep.subr.mxu0 0.0
    %1021 = vmatpush1.msra.mxu0 0.0
    %1022 = vmatprep.subr.mxu0 0.0
    %1023 = vmatpush1.msra.mxu0 0.0
    %1024 = vmatprep.subr.mxu0 0.0
    %1025 = vmatpush1.msra.mxu0 0.0
    %1026 = vmatprep.subr.mxu0 0.0
    %1027 = vmatpush1.msra.mxu0 0.0
    %1028 = vmatprep.subr.mxu0 0.0
    %1029 = vmatpush1.msra.mxu0 0.0
    %1030 = vmatprep.subr.mxu0 0.0
    %1031 = vmatpush1.msra.mxu0 0.0
    %1032 = vmatprep.subr.mxu0 0.0
    %1033 = vmatpush1.msra.mxu0 0.0
    %1034 = vmatprep.subr.mxu0 0.0
    %1035 = vmatpush1.msra.mxu0 0.0
    %1036 = vmatprep.subr.mxu0 0.0
    %1037 = vmatpush1.msra.mxu0 0.0
    %1038 = vmatprep.subr.mxu0 0.0
    %1039 = vmatpush1.msra.mxu0 0.0
    %1040 = vmatprep.subr.mxu0 0.0
    %1041 = vmatpush1.msra.mxu0 0.0
    %1042 = vmatprep.subr.mxu0 0.0
    %1043 = vmatpush1.msra.mxu0 0.0
    %1044 = vmatprep.mubr.f32.mxu0 0.0
    %1045 = vmatmul.mubr.f32.gmra.mrb[0].mxu0 %v978
    %v1046 = vpop.f32.mrb[0].mxu0
    %v1047 = vadd.f32 0.0, %v1046
    %v1048 = vpop.f32.mrb[0].mxu0
    %1049 = vdwg.mxu0
    %v1050 = vrot.slane %v888, 4
    %v1051 = vadd.f32 %v888, %v1050
    %v1052 = vrot.slane %v1051, 2
    %v1053 = vadd.f32 %v1051, %v1052
    %v1054 = vrot.slane %v1053, 1
    %v1055 = vadd.f32 %v1053, %v1054
    %1056 = vmatprep.subr.mxu0 0.0
    %1057 = vmatpush1.xpose.msra.mxu0 %v108
    %1058 = vmatprep.subr.mxu0 0.0
    %1059 = vmatpush1.xpose.msra.mxu0 0.0
    %1060 = vmatprep.subr.mxu0 0.0
    %1061 = vmatpush1.xpose.msra.mxu0 0.0
    %1062 = vmatprep.subr.mxu0 0.0
    %1063 = vmatpush1.xpose.msra.mxu0 0.0
    %1064 = vmatprep.subr.mxu0 0.0
    %1065 = vmatpush1.xpose.msra.mxu0 0.0
    %1066 = vmatprep.subr.mxu0 0.0
    %1067 = vmatpush1.xpose.msra.mxu0 0.0
    %1068 = vmatprep.subr.mxu0 0.0
    %1069 = vmatpush1.xpose.msra.mxu0 0.0
    %1070 = vmatprep.subr.mxu0 0.0
    %1071 = vmatpush1.xpose.msra.mxu0 0.0
    %1072 = vmatprep.subr.mxu0 0.0
    %1073 = vmatpush1.xpose.msra.mxu0 0.0
    %1074 = vmatprep.subr.mxu0 0.0
    %1075 = vmatpush1.xpose.msra.mxu0 0.0
    %1076 = vmatprep.subr.mxu0 0.0
    %1077 = vmatpush1.xpose.msra.mxu0 0.0
    %1078 = vmatprep.subr.mxu0 0.0
    %1079 = vmatpush1.xpose.msra.mxu0 0.0
    %1080 = vmatprep.subr.mxu0 0.0
    %1081 = vmatpush1.xpose.msra.mxu0 0.0
    %1082 = vmatprep.subr.mxu0 0.0
    %1083 = vmatpush1.xpose.msra.mxu0 0.0
    %1084 = vmatprep.subr.mxu0 0.0
    %1085 = vmatpush1.xpose.msra.mxu0 0.0
    %1086 = vmatprep.subr.mxu0 0.0
    %1087 = vmatpush1.xpose.msra.mxu0 0.0
    %1088 = vmatprep.subr.mxu0 0.0
    %1089 = vmatpush1.xpose.msra.mxu0 0.0
    %1090 = vmatprep.subr.mxu0 0.0
    %1091 = vmatpush1.xpose.msra.mxu0 0.0
    %1092 = vmatprep.subr.mxu0 0.0
    %1093 = vmatpush1.xpose.msra.mxu0 0.0
    %1094 = vmatprep.subr.mxu0 0.0
    %1095 = vmatpush1.xpose.msra.mxu0 0.0
    %1096 = vmatprep.subr.mxu0 0.0
    %1097 = vmatpush1.xpose.msra.mxu0 0.0
    %1098 = vmatprep.subr.mxu0 0.0
    %1099 = vmatpush1.xpose.msra.mxu0 0.0
    %1100 = vmatprep.subr.mxu0 0.0
    %1101 = vmatpush1.xpose.msra.mxu0 0.0
    %1102 = vmatprep.subr.mxu0 0.0
    %1103 = vmatpush1.xpose.msra.mxu0 0.0
    %1104 = vmatprep.subr.mxu0 0.0
    %1105 = vmatpush1.xpose.msra.mxu0 0.0
    %1106 = vmatprep.subr.mxu0 0.0
    %1107 = vmatpush1.xpose.msra.mxu0 0.0
    %1108 = vmatprep.subr.mxu0 0.0
    %1109 = vmatpush1.xpose.msra.mxu0 0.0
    %1110 = vmatprep.subr.mxu0 0.0
    %1111 = vmatpush1.xpose.msra.mxu0 0.0
    %1112 = vmatprep.subr.mxu0 0.0
    %1113 = vmatpush1.xpose.msra.mxu0 0.0
    %1114 = vmatprep.subr.mxu0 0.0
    %1115 = vmatpush1.xpose.msra.mxu0 0.0
    %1116 = vmatprep.subr.mxu0 0.0
    %1117 = vmatpush1.xpose.msra.mxu0 0.0
    %1118 = vmatprep.subr.mxu0 0.0
    %1119 = vmatpush1.xpose.msra.mxu0 0.0
    %1120 = vmatprep.mubr.f32.mxu0 0.0
    %1121 = vmatmul.mubr.f32.gmra.mrb[0].mxu0 %v1055
    %v1122 = vpop.f32.mrb[0].mxu0
    %v1123 = vadd.f32 0.0, %v1122
    %v1124 = vpop.f32.mrb[0].mxu0
    %1125 = vdwg.mxu0
    %v1126 = vsel %vm965, %v1123, -inf
    %1127 = vmax.xlane.f32.xlu0 %v1126
    %v1128 = vpop.xlane.xlu0 %1127
    %v1129 = vsub.f32 %v1123, %v1128
    %v1130 = vmul.f32 %v1129, 1.442695
    %v1131 = vpow.pop %v1130
    %v1132 = vsel %vm965, %v1131, 0.0
    %1133 = vadd.xlane.f32.xlu0 %v1132
    %v1134 = vpop.xlane.xlu0 %1133
    %v1135 = vrcp.pop %v1134
    %v1136 = vmul.f32 %v1131, %v1135
    %v1138 = vsel %vm122, %v1136, 0
    %1140 = vmatprep.subr.mxu0 0.0
    %1141 = vmatpush1.msra.mxu0 %v108
    %1142 = vmatprep.subr.mxu0 0.0
    %1143 = vmatpush1.msra.mxu0 0.0
    %1144 = vmatprep.subr.mxu0 0.0
    %1145 = vmatpush1.msra.mxu0 0.0
    %1146 = vmatprep.subr.mxu0 0.0
    %1147 = vmatpush1.msra.mxu0 0.0
    %1148 = vmatprep.subr.mxu0 0.0
    %1149 = vmatpush1.msra.mxu0 0.0
    %1150 = vmatprep.subr.mxu0 0.0
    %1151 = vmatpush1.msra.mxu0 0.0
    %1152 = vmatprep.subr.mxu0 0.0
    %1153 = vmatpush1.msra.mxu0 0.0
    %1154 = vmatprep.subr.mxu0 0.0
    %1155 = vmatpush1.msra.mxu0 0.0
    %1156 = vmatprep.subr.mxu0 0.0
    %1157 = vmatpush1.msra.mxu0 0.0
    %1158 = vmatprep.subr.mxu0 0.0
    %1159 = vmatpush1.msra.mxu0 0.0
    %1160 = vmatprep.subr.mxu0 0.0
    %1161 = vmatpush1.msra.mxu0 0.0
    %1162 = vmatprep.subr.mxu0 0.0
    %1163 = vmatpush1.msra.mxu0 0.0
    %1164 = vmatprep.subr.mxu0 0.0
    %1165 = vmatpush1.msra.mxu0 0.0
    %1166 = vmatprep.subr.mxu0 0.0
    %1167 = vmatpush1.msra.mxu0 0.0
    %1168 = vmatprep.subr.mxu0 0.0
    %1169 = vmatpush1.msra.mxu0 0.0
    %1170 = vmatprep.subr.mxu0 0.0
    %1171 = vmatpush1.msra.mxu0 0.0
    %1172 = vmatprep.subr.mxu0 0.0
    %1173 = vmatpush1.msra.mxu0 0.0
    %1174 = vmatprep.subr.mxu0 0.0
    %1175 = vmatpush1.msra.mxu0 0.0
    %1176 = vmatprep.subr.mxu0 0.0
    %1177 = vmatpush1.msra.mxu0 0.0
    %1178 = vmatprep.subr.mxu0 0.0
    %1179 = vmatpush1.msra.mxu0 0.0
    %1180 = vmatprep.subr.mxu0 0.0
    %1181 = vmatpush1.msra.mxu0 0.0
    %1182 = vmatprep.subr.mxu0 0.0
    %1183 = vmatpush1.msra.mxu0 0.0
    %1184 = vmatprep.subr.mxu0 0.0
    %1185 = vmatpush1.msra.mxu0 0.0
    %1186 = vmatprep.subr.mxu0 0.0
    %1187 = vmatpush1.msra.mxu0 0.0
    %1188 = vmatprep.subr.mxu0 0.0
    %1189 = vmatpush1.msra.mxu0 0.0
    %1190 = vmatprep.subr.mxu0 0.0
    %1191 = vmatpush1.msra.mxu0 0.0
    %1192 = vmatprep.subr.mxu0 0.0
    %1193 = vmatpush1.msra.mxu0 0.0
    %1194 = vmatprep.subr.mxu0 0.0
    %1195 = vmatpush1.msra.mxu0 0.0
    %1196 = vmatprep.subr.mxu0 0.0
    %1197 = vmatpush1.msra.mxu0 0.0
    %1198 = vmatprep.subr.mxu0 0.0
    %1199 = vmatpush1.msra.mxu0 0.0
    %1200 = vmatprep.subr.mxu0 0.0
    %1201 = vmatpush1.msra.mxu0 0.0
    %1202 = vmatprep.subr.mxu0 0.0
    %1203 = vmatpush1.msra.mxu0 0.0
    %1204 = vmatprep.mubr.f32.mxu0 0.0
    %1205 = vmatmul.mubr.f32.gmra.mrb[0].mxu0 %v1138
    %v1206 = vpop.f32.mrb[0].mxu0
    %v1207 = vadd.f32 0.0, %v1206
    %v1208 = vpop.f32.mrb[0].mxu0
    %1209 = vdwg.mxu0
    %v1211 = vrot.slane %v1207, 7
    %vm1213 = vcmask 1040384
    %v1214 = vsel %vm1213, %v1047, %v1211
    %v1215 = vld [vmem:[#allocation10] sm:$0xff]
    %v1216 = vld [vmem:[#allocation10 + $0x8] sm:$0xff]
    %v1217 = vld [vmem:[#allocation10 + $0x10] sm:$0xff]
    %v1218 = vld [vmem:[#allocation10 + $0x18] sm:$0xff]
    %v1219 = vld [vmem:[#allocation10 + $0x20] sm:$0xff]
    %v1220 = vld [vmem:[#allocation10 + $0x28] sm:$0xff]
    %v1221 = vld [vmem:[#allocation10 + $0x30] sm:$0xff]
    %v1222 = vld [vmem:[#allocation10 + $0x38] sm:$0xff]
    %v1223 = vld [vmem:[#allocation10 + $0x40] sm:$0xff]
    %v1224 = vld [vmem:[#allocation10 + $0x48] sm:$0xff]
    %v1225 = vld [vmem:[#allocation10 + $0x50] sm:$0xff]
    %v1226 = vld [vmem:[#allocation10 + $0x58] sm:$0xff]
    %v1227 = vld [vmem:[#allocation10 + $0x60] sm:$0xff]
    %v1228 = vld [vmem:[#allocation10 + $0x68] sm:$0xff]
    %v1229 = vld [vmem:[#allocation10 + $0x70] sm:$0xff]
    %v1230 = vld [vmem:[#allocation10 + $0x78] sm:$0xff]
    %v1231 = vld [vmem:[%s10] sm:$0x1]
    %v1233 = vlaneseq
    %v1234 = vshrl.u32 %v1233, 7
    %v1235 = vsub.s32 0, %v1234
    %v1236 = vrot.slane %v1231, %v1235
    %1238 = vmatprep.subr.mxu0 0.0
    %1239 = vmatpush1.msra.mxu0 %v1215
    %1240 = vmatprep.subr.mxu0 0.0
    %1241 = vmatpush1.msra.mxu0 %v1216
    %1242 = vmatprep.subr.mxu0 0.0
    %1243 = vmatpush1.msra.mxu0 %v1217
    %1244 = vmatprep.subr.mxu0 0.0
    %1245 = vmatpush1.msra.mxu0 %v1218
    %1246 = vmatprep.subr.mxu0 0.0
    %1247 = vmatpush1.msra.mxu0 %v1219
    %1248 = vmatprep.subr.mxu0 0.0
    %1249 = vmatpush1.msra.mxu0 %v1220
    %1250 = vmatprep.subr.mxu0 0.0
    %1251 = vmatpush1.msra.mxu0 %v1221
    %1252 = vmatprep.subr.mxu0 0.0
    %1253 = vmatpush1.msra.mxu0 %v1222
    %1254 = vmatprep.subr.mxu0 0.0
    %1255 = vmatpush1.msra.mxu0 %v1223
    %1256 = vmatprep.subr.mxu0 0.0
    %1257 = vmatpush1.msra.mxu0 %v1224
    %1258 = vmatprep.subr.mxu0 0.0
    %1259 = vmatpush1.msra.mxu0 %v1225
    %1260 = vmatprep.subr.mxu0 0.0
    %1261 = vmatpush1.msra.mxu0 %v1226
    %1262 = vmatprep.subr.mxu0 0.0
    %1263 = vmatpush1.msra.mxu0 %v1227
    %1264 = vmatprep.subr.mxu0 0.0
    %1265 = vmatpush1.msra.mxu0 %v1228
    %1266 = vmatprep.subr.mxu0 0.0
    %1267 = vmatpush1.msra.mxu0 %v1229
    %1268 = vmatprep.subr.mxu0 0.0
    %1269 = vmatpush1.msra.mxu0 %v1230
    %1270 = vmatprep.subr.mxu0 0.0
    %1271 = vmatpush1.msra.mxu0 0.0
    %1272 = vmatprep.subr.mxu0 0.0
    %1273 = vmatpush1.msra.mxu0 0.0
    %1274 = vmatprep.subr.mxu0 0.0
    %1275 = vmatpush1.msra.mxu0 0.0
    %1276 = vmatprep.subr.mxu0 0.0
    %1277 = vmatpush1.msra.mxu0 0.0
    %1278 = vmatprep.subr.mxu0 0.0
    %1279 = vmatpush1.msra.mxu0 0.0
    %1280 = vmatprep.subr.mxu0 0.0
    %1281 = vmatpush1.msra.mxu0 0.0
    %1282 = vmatprep.subr.mxu0 0.0
    %1283 = vmatpush1.msra.mxu0 0.0
    %1284 = vmatprep.subr.mxu0 0.0
    %1285 = vmatpush1.msra.mxu0 0.0
    %1286 = vmatprep.subr.mxu0 0.0
    %1287 = vmatpush1.msra.mxu0 0.0
    %1288 = vmatprep.subr.mxu0 0.0
    %1289 = vmatpush1.msra.mxu0 0.0
    %1290 = vmatprep.subr.mxu0 0.0
    %1291 = vmatpush1.msra.mxu0 0.0
    %1292 = vmatprep.subr.mxu0 0.0
    %1293 = vmatpush1.msra.mxu0 0.0
    %1294 = vmatprep.subr.mxu0 0.0
    %1295 = vmatpush1.msra.mxu0 0.0
    %1296 = vmatprep.subr.mxu0 0.0
    %1297 = vmatpush1.msra.mxu0 0.0
    %1298 = vmatprep.subr.mxu0 0.0
    %1299 = vmatpush1.msra.mxu0 0.0
    %1300 = vmatprep.subr.mxu0 0.0
    %1301 = vmatpush1.msra.mxu0 0.0
    %1302 = vmatprep.mubr.f32.mxu0 0.0
    %1303 = vmatmul.mubr.f32.gmra.mrb[0].mxu0 %v1214
    %v1304 = vpop.f32.mrb[0].mxu0
    %v1305 = vadd.f32 %v1236, %v1304
    %v1306 = vpop.f32.mrb[0].mxu0
    %1307 = vdwg.mxu0
    %1308 = vst [vmem:[#allocation11] sm:$0x3] %v1305
    // Predicated region
    $region66: #{tpu_custom_call.1} parent=1 // pred_check
      _
    $region67: #{tpu_custom_call.1} parent=1 // pred_check_branch
      %1310 = sbr.rel (0) target = $region69
    $region68: #{tpu_custom_call.1} parent=1 // pred_region
      %s1312 = ssub.s32 32, 32
      %1313 = vsyncadd [#allocation4], %s1312
      %s1315 = sshll.u32 [#allocation11], 4
      %s1316 = int_to_ptr.vmem [resolvable:$true] %s1315
      %1318 = dma.vmem_to_hbm [thread:$0]  %s1316, 32, %s11, [#allocation4]
    $region69: #{tpu_custom_call.1} parent=1 // pred_fallthru
      _
    // Predicated region
    $region70: #{tpu_custom_call.1} parent=1 // pred_check
      _
    $region71: #{tpu_custom_call.1} parent=1 // pred_check_branch
      %1320 = sbr.rel (0) target = $region73
    $region72: #{tpu_custom_call.1} parent=1 // pred_region
      %1321 = dma.done [#allocation4], 32
    $region73: #{tpu_custom_call.1} parent=1 // pred_fallthru
      _
    %1322 = vsyncpa [#allocation3], 1
    %1323 = vsyncpa [#allocation6], 1
    %1324 = vsyncpa [#allocation9], 1
    %1325 = vsyncpa [#allocation4], 1

</llo_original>
